<compile_context>
chip_gen: v5e
topology: v5e:2x2
jax: 0.10.0
libtpu: 0.0.40
codegen_flags: <defaults>
</compile_context>

<pallas_src>
import jax
import jax.numpy as jnp
from jax.experimental import pallas as pl
from jax.experimental.pallas import tpu as pltpu

# MXU input dtype for the conv matmuls (accumulation is always f32).
COMPUTE_DTYPE = jnp.bfloat16


def _make_encoder_kernel(cout, wp, wcomp, g, we, offsets):
    """Fused [conv3x3+BN+ReLU] x2 + MaxPool2d(2,2) over nb lane-concatenated images."""

    def kernel(xe_ref, w1_ref, s1_ref, b1_ref, w2_ref, s2_ref, b2_ref,
               mask_ref, sel_ref, conv_ref, pool_ref, ye_ref):

        def conv_bn_relu(src_ref, w_ref, s_ref, b_ref):
            # Every 3x3 tap is a contiguous lane slice of the guard-extended buffer,
            # so the conv is a single wide-K MXU matmul (K = 9 * C_in).
            taps = jnp.concatenate(
                [src_ref[:, g + o:g + o + wcomp] for o in offsets], axis=0)
            acc = jnp.dot(w_ref[...], taps.astype(w_ref.dtype),
                          preferred_element_type=jnp.float32)        # (cout, wcomp) f32
            # Folded eval-BatchNorm (+ conv bias) + ReLU epilogue, in f32.
            return jnp.maximum(acc * s_ref[...] + b_ref[...], 0.0)

        # Guard bands of the conv1 scratch are never touched by the interior store
        # below -> memset just those two 128-lane spans (no full-buffer memset).
        ye_ref[:, :g] = jnp.zeros((cout, g), jnp.float32)
        ye_ref[:, g + wcomp:] = jnp.zeros((cout, we - g - wcomp), jnp.float32)

        # conv1 + BN + ReLU.  Zero padding columns with the hoisted interior mask and
        # hand off to conv2 with ONE lane-dense, 128-aligned store (replaces the old
        # per-row copy loop).  The conv1 activation never leaves VMEM.
        y1 = conv_bn_relu(xe_ref, w1_ref, s1_ref, b1_ref)
        ye_ref[:, g:g + wcomp] = y1 * mask_ref[...]

        # conv2 + BN + ReLU; stored in the padded lane-dense layout (wrapper strips
        # padding with a cheap slice/reshape).
        y2 = conv_bn_relu(ye_ref, w2_ref, s2_ref, b2_ref)
        conv_ref[...] = y2.astype(conv_ref.dtype)

        # MaxPool2d(2,2): pair every column with its right / lower neighbour via lane
        # shifts (wrap-around only touches discarded padding columns), then ONE
        # 0/1-selection matmul picks the top-left interior column of each 2x2 window,
        # dropping padding columns and compacting lanes in the same MXU pass.
        right = jnp.concatenate([y2[:, 1:], y2[:, :1]], axis=1)      # col + 1
        cm = jnp.maximum(y2, right)
        down = jnp.concatenate([cm[:, wp:], cm[:, :wp]], axis=1)     # col + Wp
        cm = jnp.maximum(cm, down)
        pool_ref[...] = jnp.dot(cm, sel_ref[...],
                                preferred_element_type=jnp.float32
                                ).astype(pool_ref.dtype)

    return kernel


def _pick_nb(n, pool_lanes_per_image):
    """Images per grid step: widen lanes toward >=128 while keeping >=2 grid steps
    (megacore) whenever the batch allows it."""
    min_steps = 2 if n >= 2 else 1
    divisors = [d for d in range(1, n + 1) if n % d == 0 and n // d >= min_steps]
    for d in divisors:
        if d * pool_lanes_per_image >= 128:
            return d
    return divisors[-1]


def make_conv_params(key, cin, cout, eps=1e-5, dtype=COMPUTE_DTYPE):
    """Deterministic PyTorch-shaped Conv2d(3x3)+eval-BN params, kernel-packed."""
    kw, kb = jax.random.split(key)
    # PyTorch Conv2d weight layout is (Cout, Cin, 3, 3).
    w_oihw = jax.random.normal(kw, (cout, cin, 3, 3), jnp.float32) * 0.1
    bias = jax.random.normal(kb, (cout,), jnp.float32) * 0.1
    # Pack as (Cout, 9*Cin): column = (dy*3 + dx)*Cin + ci (tap-major), matching the
    # in-kernel tap concatenation order.
    w2d = jnp.transpose(w_oihw, (0, 2, 3, 1)).reshape(cout, 9 * cin).astype(dtype)
    # Fold eval-mode BatchNorm (gamma=1, beta=0, mean=0, var=1) and the conv bias:
    #   y = relu((conv + bias) * s + (beta - mean*s)),   s = gamma / sqrt(var + eps)
    s_val = (1.0 + eps) ** -0.5
    s = jnp.full((cout, 1), s_val, jnp.float32)
    off = bias.reshape(cout, 1) * s
    return w2d, s, off


def encoder_block_forward(x_nchw, params1, params2, nb=None):
    """Fused ConvBlock (conv-bn-relu x2) + MaxPool2d(2,2).

    Returns (x_conv, x_pool) in NCHW, matching the PyTorch EncoderBlock."""
    n, cin, h, w = x_nchw.shape
    w1, s1, b1 = params1
    w2, s2, b2 = params2
    cout = w1.shape[0]
    assert h % 2 == 0 and w % 2 == 0, "MaxPool2d(2,2) assumes even H, W"
    assert w1.shape == (cout, 9 * cin) and w2.shape == (cout, 9 * cout)

    hp, wp = h + 2, w + 2
    pe = hp * wp                              # one zero-padded image, flattened
    ho, wo = h // 2, w // 2
    if nb is None:
        nb = _pick_nb(n, ho * wo)
    assert n % nb == 0
    ns = n // nb                              # grid steps
    wtot = nb * pe                            # nb images concatenated along lanes
    g = 128                                   # 128-aligned guard band (>= wp + 1)
    assert g >= wp + 1
    wcomp = pl.cdiv(wtot, 128) * 128          # lane-dense compute width
    we = g + wcomp + g                        # guard | compute | guard
    npool = nb * ho * wo
    offsets = [(dy - 1) * wp + (dx - 1) for dy in range(3) for dx in range(3)]

    # ---- Wrapper-side layout plumbing (bandwidth-bound XLA ops, hoisted out of the
    # ---- kernel): zero-pad, lane-concatenate nb images per step, add guard bands.
    xpad = jnp.pad(x_nchw, ((0, 0), (0, 0), (1, 1), (1, 1)))            # (N,Cin,Hp,Wp)
    xflat = (xpad.reshape(ns, nb, cin, pe).transpose(0, 2, 1, 3)
             .reshape(ns, cin, wtot))
    xe = jnp.pad(xflat, ((0, 0), (0, 0), (g, we - g - wtot)))           # (Ns,Cin,We) f32

    # Hoisted kernel constants (constant index_map -> DMA'd once, reused every step).
    col = jnp.arange(wcomp)
    pidx = col % pe
    hh, ww = pidx // wp, pidx % wp
    interior = (col < wtot) & (hh >= 1) & (hh <= h) & (ww >= 1) & (ww <= w)
    mask = interior.astype(jnp.float32).reshape(1, wcomp)               # interior cols
    j = jnp.arange(npool)
    jb, jr = j // (ho * wo), j % (ho * wo)
    jh, jw = jr // wo, jr % wo
    src = jb * pe + (2 * jh + 1) * wp + (2 * jw + 1)   # top-left column of each window
    sel = (col[:, None] == src[None, :]).astype(jnp.float32)            # (Wcomp, Npool)

    kernel = _make_encoder_kernel(cout, wp, wcomp, g, we, offsets)

    conv_pad, pool_flat = pl.pallas_call(
        kernel,
        out_shape=(jax.ShapeDtypeStruct((ns, cout, wcomp), jnp.float32),
                   jax.ShapeDtypeStruct((ns, cout, npool), jnp.float32)),
        grid=(ns,),
        in_specs=[
            pl.BlockSpec((None, cin, we), lambda i: (i, 0, 0)),          # padded input
            pl.BlockSpec((cout, 9 * cin), lambda i: (0, 0)),             # w1 (bf16)
            pl.BlockSpec((cout, 1), lambda i: (0, 0)),                   # bn1 scale
            pl.BlockSpec((cout, 1), lambda i: (0, 0)),                   # bn1 offset
            pl.BlockSpec((cout, 9 * cout), lambda i: (0, 0)),            # w2 (bf16)
            pl.BlockSpec((cout, 1), lambda i: (0, 0)),                   # bn2 scale
            pl.BlockSpec((cout, 1), lambda i: (0, 0)),                   # bn2 offset
            pl.BlockSpec((1, wcomp), lambda i: (0, 0)),                  # interior mask
            pl.BlockSpec((wcomp, npool), lambda i: (0, 0)),              # pool selection
        ],
        out_specs=(
            pl.BlockSpec((None, cout, wcomp), lambda i: (i, 0, 0)),      # conv (padded)
            pl.BlockSpec((None, cout, npool), lambda i: (i, 0, 0)),      # pool
        ),
        scratch_shapes=[
            pltpu.VMEM((cout, we), jnp.float32),   # conv1 activation (never hits HBM)
        ],
        compiler_params=pltpu.CompilerParams(
            dimension_semantics=("parallel",),
        ),
    )(xe, w1.astype(COMPUTE_DTYPE), s1, b1, w2.astype(COMPUTE_DTYPE), s2, b2, mask, sel)

    # Strip padding / de-interleave the nb-per-step lane batching (layout only).
    conv = (conv_pad[:, :, :wtot].reshape(ns, cout, nb, hp, wp)
            .transpose(0, 2, 1, 3, 4).reshape(n, cout, hp, wp)[:, :, 1:1 + h, 1:1 + w])
    pool = (pool_flat.reshape(ns, cout, nb, ho, wo)
            .transpose(0, 2, 1, 3, 4).reshape(n, cout, ho, wo))
    return conv, pool


if __name__ == "__main__":
    key = jax.random.PRNGKey(0)
    k_x, k_c1, k_c2 = jax.random.split(key, 3)

    N, Cin, Cout, H, W = 4, 4, 8, 16, 16
    x = jax.random.normal(k_x, (N, Cin, H, W), jnp.float32)   # NCHW input

    params1 = make_conv_params(k_c1, Cin, Cout)
    params2 = make_conv_params(k_c2, Cout, Cout)

    x_conv, x_pool = jax.jit(encoder_block_forward)(x, params1, params2)
    jax.block_until_ready((x_conv, x_pool))

    assert x_conv.shape == (N, Cout, H, W)
    assert x_pool.shape == (N, Cout, H // 2, W // 2)
    assert bool(jnp.all(jnp.isfinite(x_conv))) and bool(jnp.all(jnp.isfinite(x_pool)))
    # Internal consistency: x_pool must be the 2x2 / stride-2 max-pool of x_conv
    # (loose tolerance: the selection matmul may round through bf16 MXU passes).
    ref_pool = jnp.max(x_conv.reshape(N, Cout, H // 2, 2, W // 2, 2), axis=(3, 5))
    assert bool(jnp.allclose(x_pool, ref_pool, atol=2e-2, rtol=2e-2))
    print("KERNEL_OK")
</pallas_src>

<mosaic_0001>
module attributes {stable_mosaic.version = 11 : i64} {
  func.func @kernel(%arg0: i32, %arg1: memref<1x4x1024xf32, #tpu.memory_space<vmem>>, %arg2: memref<8x36xbf16, #tpu.memory_space<vmem>>, %arg3: memref<8x1xf32, #tpu.memory_space<vmem>>, %arg4: memref<8x1xf32, #tpu.memory_space<vmem>>, %arg5: memref<8x72xbf16, #tpu.memory_space<vmem>>, %arg6: memref<8x1xf32, #tpu.memory_space<vmem>>, %arg7: memref<8x1xf32, #tpu.memory_space<vmem>>, %arg8: memref<1x768xf32, #tpu.memory_space<vmem>>, %arg9: memref<768x128xf32, #tpu.memory_space<vmem>>, %arg10: memref<1x8x768xf32, #tpu.memory_space<vmem>>, %arg11: memref<1x8x128xf32, #tpu.memory_space<vmem>>, %arg12: memref<8x1024xf32, #tpu.memory_space<vmem>>) attributes {dimension_semantics = [#tpu.dimension_semantics<parallel>], iteration_bounds = array<i64: 2>, scalar_prefetch = 0 : i64, scratch_operands = 1 : i64, tpu.core_type = #tpu.core_type<tc>, window_params = [{transform_indices = @transform_0, window_bounds = array<i64: 1, 4, 1024>}, {pipeline_mode = #tpu.pipeline_mode<synchronous>, transform_indices = @transform_1, window_bounds = array<i64: 8, 36>}, {pipeline_mode = #tpu.pipeline_mode<synchronous>, transform_indices = @transform_2, window_bounds = array<i64: 8, 1>}, {pipeline_mode = #tpu.pipeline_mode<synchronous>, transform_indices = @transform_3, window_bounds = array<i64: 8, 1>}, {pipeline_mode = #tpu.pipeline_mode<synchronous>, transform_indices = @transform_4, window_bounds = array<i64: 8, 72>}, {pipeline_mode = #tpu.pipeline_mode<synchronous>, transform_indices = @transform_5, window_bounds = array<i64: 8, 1>}, {pipeline_mode = #tpu.pipeline_mode<synchronous>, transform_indices = @transform_6, window_bounds = array<i64: 8, 1>}, {pipeline_mode = #tpu.pipeline_mode<synchronous>, transform_indices = @transform_7, window_bounds = array<i64: 1, 768>}, {pipeline_mode = #tpu.pipeline_mode<synchronous>, transform_indices = @transform_8, window_bounds = array<i64: 768, 128>}, {transform_indices = @transform_9, window_bounds = array<i64: 1, 8, 768>}, {transform_indices = @transform_10, window_bounds = array<i64: 1, 8, 128>}]} {
    %cst = arith.constant 0.000000e+00 : f32
    %0 = vector.broadcast %cst : f32 to vector<8x128xf32>
    %c0 = arith.constant 0 : index
    %c0_0 = arith.constant 0 : index
    %1 = vector.load %arg12[%c0, %c0_0] : memref<8x1024xf32, #tpu.memory_space<vmem>>, vector<8x128xf32>
    tpu.vector_store %arg12[%c0, %c0_0], %0 {strides = array<i32>} : memref<8x1024xf32, #tpu.memory_space<vmem>>, vector<8x128xf32>,
    %cst_1 = arith.constant 0.000000e+00 : f32
    %2 = vector.broadcast %cst_1 : f32 to vector<8x128xf32>
    %c0_2 = arith.constant 0 : index
    %c896 = arith.constant 896 : index
    %3 = vector.load %arg12[%c0_2, %c896] : memref<8x1024xf32, #tpu.memory_space<vmem>>, vector<8x128xf32>
    tpu.vector_store %arg12[%c0_2, %c896], %2 {strides = array<i32>} : memref<8x1024xf32, #tpu.memory_space<vmem>>, vector<8x128xf32>,
    %c0_3 = arith.constant 0 : index
    %c0_4 = arith.constant 0 : index
    %c109 = arith.constant 109 : index
    %4 = vector.load %arg1[%c0_3, %c0_4, %c109] : memref<1x4x1024xf32, #tpu.memory_space<vmem>>, vector<1x4x768xf32>
    %5 = vector.shape_cast %4 : vector<1x4x768xf32> to vector<4x768xf32>
    %c0_5 = arith.constant 0 : index
    %c0_6 = arith.constant 0 : index
    %c110 = arith.constant 110 : index
    %6 = vector.load %arg1[%c0_5, %c0_6, %c110] : memref<1x4x1024xf32, #tpu.memory_space<vmem>>, vector<1x4x768xf32>
    %7 = vector.shape_cast %6 : vector<1x4x768xf32> to vector<4x768xf32>
    %c0_7 = arith.constant 0 : index
    %c0_8 = arith.constant 0 : index
    %c111 = arith.constant 111 : index
    %8 = vector.load %arg1[%c0_7, %c0_8, %c111] : memref<1x4x1024xf32, #tpu.memory_space<vmem>>, vector<1x4x768xf32>
    %9 = vector.shape_cast %8 : vector<1x4x768xf32> to vector<4x768xf32>
    %c0_9 = arith.constant 0 : index
    %c0_10 = arith.constant 0 : index
    %c127 = arith.constant 127 : index
    %10 = vector.load %arg1[%c0_9, %c0_10, %c127] : memref<1x4x1024xf32, #tpu.memory_space<vmem>>, vector<1x4x768xf32>
    %11 = vector.shape_cast %10 : vector<1x4x768xf32> to vector<4x768xf32>
    %c0_11 = arith.constant 0 : index
    %c0_12 = arith.constant 0 : index
    %c128 = arith.constant 128 : index
    %12 = vector.load %arg1[%c0_11, %c0_12, %c128] : memref<1x4x1024xf32, #tpu.memory_space<vmem>>, vector<1x4x768xf32>
    %13 = vector.shape_cast %12 : vector<1x4x768xf32> to vector<4x768xf32>
    %c0_13 = arith.constant 0 : index
    %c0_14 = arith.constant 0 : index
    %c129 = arith.constant 129 : index
    %14 = vector.load %arg1[%c0_13, %c0_14, %c129] : memref<1x4x1024xf32, #tpu.memory_space<vmem>>, vector<1x4x768xf32>
    %15 = vector.shape_cast %14 : vector<1x4x768xf32> to vector<4x768xf32>
    %c0_15 = arith.constant 0 : index
    %c0_16 = arith.constant 0 : index
    %c145 = arith.constant 145 : index
    %16 = vector.load %arg1[%c0_15, %c0_16, %c145] : memref<1x4x1024xf32, #tpu.memory_space<vmem>>, vector<1x4x768xf32>
    %17 = vector.shape_cast %16 : vector<1x4x768xf32> to vector<4x768xf32>
    %c0_17 = arith.constant 0 : index
    %c0_18 = arith.constant 0 : index
    %c146 = arith.constant 146 : index
    %18 = vector.load %arg1[%c0_17, %c0_18, %c146] : memref<1x4x1024xf32, #tpu.memory_space<vmem>>, vector<1x4x768xf32>
    %19 = vector.shape_cast %18 : vector<1x4x768xf32> to vector<4x768xf32>
    %c0_19 = arith.constant 0 : index
    %c0_20 = arith.constant 0 : index
    %c147 = arith.constant 147 : index
    %20 = vector.load %arg1[%c0_19, %c0_20, %c147] : memref<1x4x1024xf32, #tpu.memory_space<vmem>>, vector<1x4x768xf32>
    %21 = vector.shape_cast %20 : vector<1x4x768xf32> to vector<4x768xf32>
    %22 = tpu.concatenate %5, %7, %9, %11, %13, %15, %17, %19, %21 in 0 : vector<4x768xf32>, vector<4x768xf32>, vector<4x768xf32>, vector<4x768xf32>, vector<4x768xf32>, vector<4x768xf32>, vector<4x768xf32>, vector<4x768xf32>, vector<4x768xf32> -> vector<36x768xf32>
    %c0_21 = arith.constant 0 : index
    %c0_22 = arith.constant 0 : index
    %23 = vector.load %arg2[%c0_21, %c0_22] : memref<8x36xbf16, #tpu.memory_space<vmem>>, vector<8x36xbf16>
    %24 = arith.truncf %22 : vector<36x768xf32> to vector<36x768xbf16>
    %cst_23 = arith.constant dense<0.000000e+00> : vector<8x768xf32>
    %25 = tpu.matmul %23, %24, %cst_23 {dimension_numbers = #tpu.dot_dimension_numbers<[1], [0], [0], [1], [0, 0, 1, 1], [], []>} : vector<8x36xbf16>, vector<36x768xbf16>, vector<8x768xf32> -> vector<8x768xf32>
    %c0_24 = arith.constant 0 : index
    %c0_25 = arith.constant 0 : index
    %26 = vector.load %arg3[%c0_24, %c0_25] : memref<8x1xf32, #tpu.memory_space<vmem>>, vector<8x1xf32>
    %27 = vector.broadcast %26 : vector<8x1xf32> to vector<8x768xf32>
    %28 = arith.mulf %25, %27 : vector<8x768xf32>
    %c0_26 = arith.constant 0 : index
    %c0_27 = arith.constant 0 : index
    %29 = vector.load %arg4[%c0_26, %c0_27] : memref<8x1xf32, #tpu.memory_space<vmem>>, vector<8x1xf32>
    %30 = vector.broadcast %29 : vector<8x1xf32> to vector<8x768xf32>
    %31 = arith.addf %28, %30 : vector<8x768xf32>
    %cst_28 = arith.constant 0.000000e+00 : f32
    %32 = vector.broadcast %cst_28 : f32 to vector<8x768xf32>
    %33 = arith.maximumf %31, %32 : vector<8x768xf32>
    %c0_29 = arith.constant 0 : index
    %c0_30 = arith.constant 0 : index
    %34 = vector.load %arg8[%c0_29, %c0_30] : memref<1x768xf32, #tpu.memory_space<vmem>>, vector<1x768xf32>
    %35 = vector.broadcast %34 : vector<1x768xf32> to vector<8x768xf32>
    %36 = arith.mulf %33, %35 : vector<8x768xf32>
    %c0_31 = arith.constant 0 : index
    %c128_32 = arith.constant 128 : index
    %37 = vector.load %arg12[%c0_31, %c128_32] : memref<8x1024xf32, #tpu.memory_space<vmem>>, vector<8x768xf32>
    tpu.vector_store %arg12[%c0_31, %c128_32], %36 {strides = array<i32>} : memref<8x1024xf32, #tpu.memory_space<vmem>>, vector<8x768xf32>,
    %c0_33 = arith.constant 0 : index
    %c109_34 = arith.constant 109 : index
    %38 = vector.load %arg12[%c0_33, %c109_34] : memref<8x1024xf32, #tpu.memory_space<vmem>>, vector<8x768xf32>
    %c0_35 = arith.constant 0 : index
    %c110_36 = arith.constant 110 : index
    %39 = vector.load %arg12[%c0_35, %c110_36] : memref<8x1024xf32, #tpu.memory_space<vmem>>, vector<8x768xf32>
    %c0_37 = arith.constant 0 : index
    %c111_38 = arith.constant 111 : index
    %40 = vector.load %arg12[%c0_37, %c111_38] : memref<8x1024xf32, #tpu.memory_space<vmem>>, vector<8x768xf32>
    %c0_39 = arith.constant 0 : index
    %c127_40 = arith.constant 127 : index
    %41 = vector.load %arg12[%c0_39, %c127_40] : memref<8x1024xf32, #tpu.memory_space<vmem>>, vector<8x768xf32>
    %c0_41 = arith.constant 0 : index
    %c128_42 = arith.constant 128 : index
    %42 = vector.load %arg12[%c0_41, %c128_42] : memref<8x1024xf32, #tpu.memory_space<vmem>>, vector<8x768xf32>
    %c0_43 = arith.constant 0 : index
    %c129_44 = arith.constant 129 : index
    %43 = vector.load %arg12[%c0_43, %c129_44] : memref<8x1024xf32, #tpu.memory_space<vmem>>, vector<8x768xf32>
    %c0_45 = arith.constant 0 : index
    %c145_46 = arith.constant 145 : index
    %44 = vector.load %arg12[%c0_45, %c145_46] : memref<8x1024xf32, #tpu.memory_space<vmem>>, vector<8x768xf32>
    %c0_47 = arith.constant 0 : index
    %c146_48 = arith.constant 146 : index
    %45 = vector.load %arg12[%c0_47, %c146_48] : memref<8x1024xf32, #tpu.memory_space<vmem>>, vector<8x768xf32>
    %c0_49 = arith.constant 0 : index
    %c147_50 = arith.constant 147 : index
    %46 = vector.load %arg12[%c0_49, %c147_50] : memref<8x1024xf32, #tpu.memory_space<vmem>>, vector<8x768xf32>
    %47 = tpu.concatenate %38, %39, %40, %41, %42, %43, %44, %45, %46 in 0 : vector<8x768xf32>, vector<8x768xf32>, vector<8x768xf32>, vector<8x768xf32>, vector<8x768xf32>, vector<8x768xf32>, vector<8x768xf32>, vector<8x768xf32>, vector<8x768xf32> -> vector<72x768xf32>
    %c0_51 = arith.constant 0 : index
    %c0_52 = arith.constant 0 : index
    %48 = vector.load %arg5[%c0_51, %c0_52] : memref<8x72xbf16, #tpu.memory_space<vmem>>, vector<8x72xbf16>
    %49 = arith.truncf %47 : vector<72x768xf32> to vector<72x768xbf16>
    %cst_53 = arith.constant dense<0.000000e+00> : vector<8x768xf32>
    %50 = tpu.matmul %48, %49, %cst_53 {dimension_numbers = #tpu.dot_dimension_numbers<[1], [0], [0], [1], [0, 0, 1, 1], [], []>} : vector<8x72xbf16>, vector<72x768xbf16>, vector<8x768xf32> -> vector<8x768xf32>
    %c0_54 = arith.constant 0 : index
    %c0_55 = arith.constant 0 : index
    %51 = vector.load %arg6[%c0_54, %c0_55] : memref<8x1xf32, #tpu.memory_space<vmem>>, vector<8x1xf32>
    %52 = vector.broadcast %51 : vector<8x1xf32> to vector<8x768xf32>
    %53 = arith.mulf %50, %52 : vector<8x768xf32>
    %c0_56 = arith.constant 0 : index
    %c0_57 = arith.constant 0 : index
    %54 = vector.load %arg7[%c0_56, %c0_57] : memref<8x1xf32, #tpu.memory_space<vmem>>, vector<8x1xf32>
    %55 = vector.broadcast %54 : vector<8x1xf32> to vector<8x768xf32>
    %56 = arith.addf %53, %55 : vector<8x768xf32>
    %cst_58 = arith.constant 0.000000e+00 : f32
    %57 = vector.broadcast %cst_58 : f32 to vector<8x768xf32>
    %58 = arith.maximumf %56, %57 : vector<8x768xf32>
    %c0_59 = arith.constant 0 : index
    %c0_60 = arith.constant 0 : index
    %c0_61 = arith.constant 0 : index
    %59 = vector.load %arg10[%c0_59, %c0_60, %c0_61] : memref<1x8x768xf32, #tpu.memory_space<vmem>>, vector<1x8x768xf32>
    %60 = vector.shape_cast %59 : vector<1x8x768xf32> to vector<8x768xf32>
    %61 = vector.shape_cast %58 : vector<8x768xf32> to vector<1x8x768xf32>
    tpu.vector_store %arg10[%c0_59, %c0_60, %c0_61], %61 {strides = array<i32>} : memref<1x8x768xf32, #tpu.memory_space<vmem>>, vector<1x8x768xf32>,
    %62 = vector.extract_strided_slice %58 {offsets = [0, 1], sizes = [8, 767], strides = [1, 1]} : vector<8x768xf32> to vector<8x767xf32>
    %63 = vector.extract_strided_slice %58 {offsets = [0, 0], sizes = [8, 1], strides = [1, 1]} : vector<8x768xf32> to vector<8x1xf32>
    %64 = tpu.concatenate %62, %63 in 1 : vector<8x767xf32>, vector<8x1xf32> -> vector<8x768xf32>
    %65 = arith.maximumf %58, %64 : vector<8x768xf32>
    %66 = vector.extract_strided_slice %65 {offsets = [0, 18], sizes = [8, 750], strides = [1, 1]} : vector<8x768xf32> to vector<8x750xf32>
    %67 = vector.extract_strided_slice %65 {offsets = [0, 0], sizes = [8, 18], strides = [1, 1]} : vector<8x768xf32> to vector<8x18xf32>
    %68 = tpu.concatenate %66, %67 in 1 : vector<8x750xf32>, vector<8x18xf32> -> vector<8x768xf32>
    %69 = arith.maximumf %65, %68 : vector<8x768xf32>
    %c0_62 = arith.constant 0 : index
    %c0_63 = arith.constant 0 : index
    %70 = vector.load %arg9[%c0_62, %c0_63] : memref<768x128xf32, #tpu.memory_space<vmem>>, vector<768x128xf32>
    %cst_64 = arith.constant dense<0.000000e+00> : vector<8x128xf32>
    %71 = tpu.matmul %69, %70, %cst_64 {dimension_numbers = #tpu.dot_dimension_numbers<[1], [0], [0], [1], [0, 0, 1, 1], [], []>} : vector<8x768xf32>, vector<768x128xf32>, vector<8x128xf32> -> vector<8x128xf32>
    %c0_65 = arith.constant 0 : index
    %c0_66 = arith.constant 0 : index
    %c0_67 = arith.constant 0 : index
    %72 = vector.load %arg11[%c0_65, %c0_66, %c0_67] : memref<1x8x128xf32, #tpu.memory_space<vmem>>, vector<1x8x128xf32>
    %73 = vector.shape_cast %72 : vector<1x8x128xf32> to vector<8x128xf32>
    %74 = vector.shape_cast %71 : vector<8x128xf32> to vector<1x8x128xf32>
    tpu.vector_store %arg11[%c0_65, %c0_66, %c0_67], %74 {strides = array<i32>} : memref<1x8x128xf32, #tpu.memory_space<vmem>>, vector<1x8x128xf32>,
    return
  }
  func.func @transform_0(%arg0: i32) -> (i32, i32, i32) {
    %c0_i32 = arith.constant 0 : i32
    %c0_i32_0 = arith.constant 0 : i32
    %c0_i32_1 = arith.constant 0 : i32
    return %arg0, %c0_i32, %c0_i32_0 : i32, i32, i32
  }
  func.func @transform_1(%arg0: i32) -> (i32, i32) {
    %c0_i32 = arith.constant 0 : i32
    %c0_i32_0 = arith.constant 0 : i32
    %c0_i32_1 = arith.constant 0 : i32
    return %c0_i32, %c0_i32_0 : i32, i32
  }
  func.func @transform_2(%arg0: i32) -> (i32, i32) {
    %c0_i32 = arith.constant 0 : i32
    %c0_i32_0 = arith.constant 0 : i32
    %c0_i32_1 = arith.constant 0 : i32
    return %c0_i32, %c0_i32_0 : i32, i32
  }
  func.func @transform_3(%arg0: i32) -> (i32, i32) {
    %c0_i32 = arith.constant 0 : i32
    %c0_i32_0 = arith.constant 0 : i32
    %c0_i32_1 = arith.constant 0 : i32
    return %c0_i32, %c0_i32_0 : i32, i32
  }
  func.func @transform_4(%arg0: i32) -> (i32, i32) {
    %c0_i32 = arith.constant 0 : i32
    %c0_i32_0 = arith.constant 0 : i32
    %c0_i32_1 = arith.constant 0 : i32
    return %c0_i32, %c0_i32_0 : i32, i32
  }
  func.func @transform_5(%arg0: i32) -> (i32, i32) {
    %c0_i32 = arith.constant 0 : i32
    %c0_i32_0 = arith.constant 0 : i32
    %c0_i32_1 = arith.constant 0 : i32
    return %c0_i32, %c0_i32_0 : i32, i32
  }
  func.func @transform_6(%arg0: i32) -> (i32, i32) {
    %c0_i32 = arith.constant 0 : i32
    %c0_i32_0 = arith.constant 0 : i32
    %c0_i32_1 = arith.constant 0 : i32
    return %c0_i32, %c0_i32_0 : i32, i32
  }
  func.func @transform_7(%arg0: i32) -> (i32, i32) {
    %c0_i32 = arith.constant 0 : i32
    %c0_i32_0 = arith.constant 0 : i32
    %c0_i32_1 = arith.constant 0 : i32
    return %c0_i32, %c0_i32_0 : i32, i32
  }
  func.func @transform_8(%arg0: i32) -> (i32, i32) {
    %c0_i32 = arith.constant 0 : i32
    %c0_i32_0 = arith.constant 0 : i32
    %c0_i32_1 = arith.constant 0 : i32
    return %c0_i32, %c0_i32_0 : i32, i32
  }
  func.func @transform_9(%arg0: i32) -> (i32, i32, i32) {
    %c0_i32 = arith.constant 0 : i32
    %c0_i32_0 = arith.constant 0 : i32
    %c0_i32_1 = arith.constant 0 : i32
    return %arg0, %c0_i32, %c0_i32_0 : i32, i32, i32
  }
  func.func @transform_10(%arg0: i32) -> (i32, i32, i32) {
    %c0_i32 = arith.constant 0 : i32
    %c0_i32_0 = arith.constant 0 : i32
    %c0_i32_1 = arith.constant 0 : i32
    return %arg0, %c0_i32, %c0_i32_0 : i32, i32, i32
  }
}

</mosaic_0001>

<llo_original>
// kernel: encoder_block_forward.1
$region0: #{encoder_block_forward.1}
  #allocation0 [shape = 'u32[]', space=smem, size = 0x4, offset = 0x4, fixed_abs, tag = 'smem constant byte address 0x4 - core index']
  #allocation1 [shape = 'u32[72,128]{1,0:T(1,128)}', space=vmem, size = 0x9000, scoped, tag = 'internal scratch']
  #allocation2 [shape = 'f32[8,1024]{1,0:T(8,128)}', space=vmem, size = 0x8000, scoped, tag = 'scratch operand']
  %s0 = inlined_call_operand.vmem [shape: f32[2,4,1024], index: 0, kind: input, shape index: {}]
  %s1 = inlined_call_operand.vmem [shape: bf16[8,36], index: 1, kind: input, shape index: {}]
  %s2 = inlined_call_operand.vmem [shape: f32[8,1], index: 2, kind: input, shape index: {}]
  %s3 = inlined_call_operand.vmem [shape: f32[8,1], index: 3, kind: input, shape index: {}]
  %s4 = inlined_call_operand.vmem [shape: bf16[8,72], index: 4, kind: input, shape index: {}]
  %s5 = inlined_call_operand.vmem [shape: f32[8,1], index: 5, kind: input, shape index: {}]
  %s6 = inlined_call_operand.vmem [shape: f32[8,1], index: 6, kind: input, shape index: {}]
  %s7 = inlined_call_operand.vmem [shape: f32[1,768], index: 7, kind: input, shape index: {}]
  %s8 = inlined_call_operand.vmem [shape: f32[768,128], index: 8, kind: input, shape index: {}]
  %s9 = inlined_call_operand.vmem [shape: f32[2,8,768], index: 9, kind: output, shape index: {0}]
  %s10 = inlined_call_operand.vmem [shape: f32[2,8,128], index: 10, kind: output, shape index: {1}]
  %11 = xla_tuple %s9, %s10
  %s12 = sld [smem:[#allocation0]]
  $region77: #{encoder_block_forward.1} parent=0
    _
  %s14 = ssub.s32 1, %s12
  %s15 = scalar_select 0, %s14, %s12
  loop: start=0, step=1, limit=4
  $region2: #{encoder_block_forward.1} parent=0 // loop_pre_header
    _
  $region3: #{encoder_block_forward.1} parent=0 // loop_header
    %s17 = sphi 0, %s21
    %p18 = scmp.ge.s32.totalorder %s17, 4
    %s27 = sphi 0, %s29
    %s30 = sphi 0, %s27
    %s31 = sphi 0, %s30
    %s47 = sphi 0, %s31
    %s51 = sphi 0, %s51
    %s53 = sphi 0, %s51
    %s54 = sphi 0, %s53
    %s68 = sphi 0, %s54
    %s72 = sphi 0, %s72
    %s74 = sphi 0, %s72
    %s75 = sphi 0, %s74
    %s89 = sphi 0, %s75
    %s93 = sphi 0, %s93
    %s95 = sphi 0, %s93
    %s96 = sphi 0, %s95
    %s110 = sphi 0, %s96
    %s114 = sphi 0, %s114
    %s116 = sphi 0, %s114
    %s117 = sphi 0, %s116
    %s131 = sphi 0, %s117
    %s135 = sphi 0, %s135
    %s137 = sphi 0, %s135
    %s138 = sphi 0, %s137
    %s152 = sphi 0, %s138
    %s156 = sphi 0, %s156
    %s158 = sphi 0, %s156
    %s159 = sphi 0, %s158
    %s173 = sphi 0, %s159
    %s177 = sphi 0, %s177
    %s179 = sphi 0, %s177
    %s180 = sphi 0, %s179
    %s194 = sphi 0, %s180
    %s198 = sphi 0, %s198
    %s200 = sphi 0, %s198
    %s201 = sphi 0, %s200
    %s215 = sphi 0, %s201
    %s221 = sphi 0, %s223
    %s224 = sphi 0, %s221
    %s225 = sphi 0, %s224
    %s241 = sphi 0, %s225
    %s247 = sphi 0, %s249
    %s250 = sphi 0, %s247
    %s251 = sphi 0, %s250
    %s267 = sphi 0, %s251
  $region4: #{encoder_block_forward.1} parent=0 // loop_header_branch
    %20 = sbr.rel (%p18) target = $region8
  $region5: #{encoder_block_forward.1} parent=0 // loop_body
    %s22 = ssub.s32 %s17, 1
    %s23 = ssub.s32 %s17, 2
    %s24 = sadd.s32 %s17, 1
    %s25 = ssub.s32 %s17, %s24
    %p26 = scmp.eq.s32.totalorder %s25, 0
    %s28 = sadd.s32 %s27, 1
    %s29 = scalar_select %p26, %s27, %s28
    %p32 = pneg %p26
    %p33 = scmp.eq.s32.totalorder %s17, 1
    %p34 = por %p32, %p33
    %p35 = scmp.ne.s32.totalorder %s27, %s30
    %p36 = scmp.eq.s32.totalorder %s17, 0
    %p37 = por %p35, %p36
    %p38 = scmp.ne.s32.totalorder %s27, %s30
    %p39 = scmp.eq.s32.totalorder %s22, 1
    %p40 = por %p38, %p39
    %p41 = scmp.ne.s32.totalorder %s30, %s31
    %p42 = scmp.eq.s32.totalorder %s22, 0
    %p43 = por %p41, %p42
    %p44 = scmp.ne.s32.totalorder %s30, %s31
    %p45 = scmp.eq.s32.totalorder %s23, 1
    %p46 = por %p44, %p45
    %p48 = scmp.ne.s32.totalorder %s31, %s47
    %p49 = scmp.eq.s32.totalorder %s23, 0
    %p50 = por %p48, %p49
    %s52 = sadd.s32 %s51, 1
    %p55 = scmp.eq.s32.totalorder %s17, 1
    %p56 = scmp.ne.s32.totalorder %s51, %s53
    %p57 = scmp.eq.s32.totalorder %s17, 0
    %p58 = por %p56, %p57
    %p59 = scmp.ne.s32.totalorder %s51, %s53
    %p60 = scmp.eq.s32.totalorder %s22, 1
    %p61 = por %p59, %p60
    %p62 = scmp.ne.s32.totalorder %s53, %s54
    %p63 = scmp.eq.s32.totalorder %s22, 0
    %p64 = por %p62, %p63
    %p65 = scmp.ne.s32.totalorder %s53, %s54
    %p66 = scmp.eq.s32.totalorder %s23, 1
    %p67 = por %p65, %p66
    %p69 = scmp.ne.s32.totalorder %s54, %s68
    %p70 = scmp.eq.s32.totalorder %s23, 0
    %p71 = por %p69, %p70
    %s73 = sadd.s32 %s72, 1
    %p76 = scmp.eq.s32.totalorder %s17, 1
    %p77 = scmp.ne.s32.totalorder %s72, %s74
    %p78 = scmp.eq.s32.totalorder %s17, 0
    %p79 = por %p77, %p78
    %p80 = scmp.ne.s32.totalorder %s72, %s74
    %p81 = scmp.eq.s32.totalorder %s22, 1
    %p82 = por %p80, %p81
    %p83 = scmp.ne.s32.totalorder %s74, %s75
    %p84 = scmp.eq.s32.totalorder %s22, 0
    %p85 = por %p83, %p84
    %p86 = scmp.ne.s32.totalorder %s74, %s75
    %p87 = scmp.eq.s32.totalorder %s23, 1
    %p88 = por %p86, %p87
    %p90 = scmp.ne.s32.totalorder %s75, %s89
    %p91 = scmp.eq.s32.totalorder %s23, 0
    %p92 = por %p90, %p91
    %s94 = sadd.s32 %s93, 1
    %p97 = scmp.eq.s32.totalorder %s17, 1
    %p98 = scmp.ne.s32.totalorder %s93, %s95
    %p99 = scmp.eq.s32.totalorder %s17, 0
    %p100 = por %p98, %p99
    %p101 = scmp.ne.s32.totalorder %s93, %s95
    %p102 = scmp.eq.s32.totalorder %s22, 1
    %p103 = por %p101, %p102
    %p104 = scmp.ne.s32.totalorder %s95, %s96
    %p105 = scmp.eq.s32.totalorder %s22, 0
    %p106 = por %p104, %p105
    %p107 = scmp.ne.s32.totalorder %s95, %s96
    %p108 = scmp.eq.s32.totalorder %s23, 1
    %p109 = por %p107, %p108
    %p111 = scmp.ne.s32.totalorder %s96, %s110
    %p112 = scmp.eq.s32.totalorder %s23, 0
    %p113 = por %p111, %p112
    %s115 = sadd.s32 %s114, 1
    %p118 = scmp.eq.s32.totalorder %s17, 1
    %p119 = scmp.ne.s32.totalorder %s114, %s116
    %p120 = scmp.eq.s32.totalorder %s17, 0
    %p121 = por %p119, %p120
    %p122 = scmp.ne.s32.totalorder %s114, %s116
    %p123 = scmp.eq.s32.totalorder %s22, 1
    %p124 = por %p122, %p123
    %p125 = scmp.ne.s32.totalorder %s116, %s117
    %p126 = scmp.eq.s32.totalorder %s22, 0
    %p127 = por %p125, %p126
    %p128 = scmp.ne.s32.totalorder %s116, %s117
    %p129 = scmp.eq.s32.totalorder %s23, 1
    %p130 = por %p128, %p129
    %p132 = scmp.ne.s32.totalorder %s117, %s131
    %p133 = scmp.eq.s32.totalorder %s23, 0
    %p134 = por %p132, %p133
    %s136 = sadd.s32 %s135, 1
    %p139 = scmp.eq.s32.totalorder %s17, 1
    %p140 = scmp.ne.s32.totalorder %s135, %s137
    %p141 = scmp.eq.s32.totalorder %s17, 0
    %p142 = por %p140, %p141
    %p143 = scmp.ne.s32.totalorder %s135, %s137
    %p144 = scmp.eq.s32.totalorder %s22, 1
    %p145 = por %p143, %p144
    %p146 = scmp.ne.s32.totalorder %s137, %s138
    %p147 = scmp.eq.s32.totalorder %s22, 0
    %p148 = por %p146, %p147
    %p149 = scmp.ne.s32.totalorder %s137, %s138
    %p150 = scmp.eq.s32.totalorder %s23, 1
    %p151 = por %p149, %p150
    %p153 = scmp.ne.s32.totalorder %s138, %s152
    %p154 = scmp.eq.s32.totalorder %s23, 0
    %p155 = por %p153, %p154
    %s157 = sadd.s32 %s156, 1
    %p160 = scmp.eq.s32.totalorder %s17, 1
    %p161 = scmp.ne.s32.totalorder %s156, %s158
    %p162 = scmp.eq.s32.totalorder %s17, 0
    %p163 = por %p161, %p162
    %p164 = scmp.ne.s32.totalorder %s156, %s158
    %p165 = scmp.eq.s32.totalorder %s22, 1
    %p166 = por %p164, %p165
    %p167 = scmp.ne.s32.totalorder %s158, %s159
    %p168 = scmp.eq.s32.totalorder %s22, 0
    %p169 = por %p167, %p168
    %p170 = scmp.ne.s32.totalorder %s158, %s159
    %p171 = scmp.eq.s32.totalorder %s23, 1
    %p172 = por %p170, %p171
    %p174 = scmp.ne.s32.totalorder %s159, %s173
    %p175 = scmp.eq.s32.totalorder %s23, 0
    %p176 = por %p174, %p175
    %s178 = sadd.s32 %s177, 1
    %p181 = scmp.eq.s32.totalorder %s17, 1
    %p182 = scmp.ne.s32.totalorder %s177, %s179
    %p183 = scmp.eq.s32.totalorder %s17, 0
    %p184 = por %p182, %p183
    %p185 = scmp.ne.s32.totalorder %s177, %s179
    %p186 = scmp.eq.s32.totalorder %s22, 1
    %p187 = por %p185, %p186
    %p188 = scmp.ne.s32.totalorder %s179, %s180
    %p189 = scmp.eq.s32.totalorder %s22, 0
    %p190 = por %p188, %p189
    %p191 = scmp.ne.s32.totalorder %s179, %s180
    %p192 = scmp.eq.s32.totalorder %s23, 1
    %p193 = por %p191, %p192
    %p195 = scmp.ne.s32.totalorder %s180, %s194
    %p196 = scmp.eq.s32.totalorder %s23, 0
    %p197 = por %p195, %p196
    %s199 = sadd.s32 %s198, 1
    %p202 = scmp.eq.s32.totalorder %s17, 1
    %p203 = scmp.ne.s32.totalorder %s198, %s200
    %p204 = scmp.eq.s32.totalorder %s17, 0
    %p205 = por %p203, %p204
    %p206 = scmp.ne.s32.totalorder %s198, %s200
    %p207 = scmp.eq.s32.totalorder %s22, 1
    %p208 = por %p206, %p207
    %p209 = scmp.ne.s32.totalorder %s200, %s201
    %p210 = scmp.eq.s32.totalorder %s22, 0
    %p211 = por %p209, %p210
    %p212 = scmp.ne.s32.totalorder %s200, %s201
    %p213 = scmp.eq.s32.totalorder %s23, 1
    %p214 = por %p212, %p213
    %p216 = scmp.ne.s32.totalorder %s201, %s215
    %p217 = scmp.eq.s32.totalorder %s23, 0
    %p218 = por %p216, %p217
    %s219 = ssub.s32 %s17, %s24
    %p220 = scmp.eq.s32.totalorder %s219, 0
    %s222 = sadd.s32 %s221, 1
    %s223 = scalar_select %p220, %s221, %s222
    %p226 = pneg %p220
    %p227 = scmp.eq.s32.totalorder %s17, 1
    %p228 = por %p226, %p227
    %p229 = scmp.ne.s32.totalorder %s221, %s224
    %p230 = scmp.eq.s32.totalorder %s17, 0
    %p231 = por %p229, %p230
    %p232 = scmp.ne.s32.totalorder %s221, %s224
    %p233 = scmp.eq.s32.totalorder %s22, 1
    %p234 = por %p232, %p233
    %p235 = scmp.ne.s32.totalorder %s224, %s225
    %p236 = scmp.eq.s32.totalorder %s22, 0
    %p237 = por %p235, %p236
    %p238 = scmp.ne.s32.totalorder %s224, %s225
    %p239 = scmp.eq.s32.totalorder %s23, 1
    %p240 = por %p238, %p239
    %p242 = scmp.ne.s32.totalorder %s225, %s241
    %p243 = scmp.eq.s32.totalorder %s23, 0
    %p244 = por %p242, %p243
    %s245 = ssub.s32 %s17, %s24
    %p246 = scmp.eq.s32.totalorder %s245, 0
    %s248 = sadd.s32 %s247, 1
    %s249 = scalar_select %p246, %s247, %s248
    %p252 = pneg %p246
    %p253 = scmp.eq.s32.totalorder %s17, 1
    %p254 = por %p252, %p253
    %p255 = scmp.ne.s32.totalorder %s247, %s250
    %p256 = scmp.eq.s32.totalorder %s17, 0
    %p257 = por %p255, %p256
    %p258 = scmp.ne.s32.totalorder %s247, %s250
    %p259 = scmp.eq.s32.totalorder %s22, 1
    %p260 = por %p258, %p259
    %p261 = scmp.ne.s32.totalorder %s250, %s251
    %p262 = scmp.eq.s32.totalorder %s22, 0
    %p263 = por %p261, %p262
    %p264 = scmp.ne.s32.totalorder %s250, %s251
    %p265 = scmp.eq.s32.totalorder %s23, 1
    %p266 = por %p264, %p265
    %p268 = scmp.ne.s32.totalorder %s251, %s267
    %p269 = scmp.eq.s32.totalorder %s23, 0
    %p270 = por %p268, %p269
    %p271 = scmp.le.s32.totalorder 1, %s17
    %p272 = scmp.lt.s32.totalorder %s17, 3
    %p273 = pnand %p271, %p272
    %p274 = pneg %p273
    // Predicated region
    $region9: #{encoder_block_forward.1} parent=5 // pred_check
      _
    $region10: #{encoder_block_forward.1} parent=5 // pred_check_branch
      %276 = sbr.rel (%p273) target = $region12
    $region11: #{encoder_block_forward.1} parent=5 // pred_region
      %s277 = ssub.s32 %s17, 1
      // Predicated region
      $region13: #{encoder_block_forward.1} parent=11 // pred_check
        %p278 = pneg %p64
      $region14: #{encoder_block_forward.1} parent=11 // pred_check_branch
        %280 = sbr.rel (%p278) target = $region16
      $region15: #{encoder_block_forward.1} parent=11 // pred_region
        _
      $region16: #{encoder_block_forward.1} parent=11 // pred_fallthru
        _
      // Predicated region
      $region17: #{encoder_block_forward.1} parent=11 // pred_check
        %p281 = pneg %p85
      $region18: #{encoder_block_forward.1} parent=11 // pred_check_branch
        %283 = sbr.rel (%p281) target = $region20
      $region19: #{encoder_block_forward.1} parent=11 // pred_region
        _
      $region20: #{encoder_block_forward.1} parent=11 // pred_fallthru
        _
      // Predicated region
      $region21: #{encoder_block_forward.1} parent=11 // pred_check
        %p284 = pneg %p106
      $region22: #{encoder_block_forward.1} parent=11 // pred_check_branch
        %286 = sbr.rel (%p284) target = $region24
      $region23: #{encoder_block_forward.1} parent=11 // pred_region
        _
      $region24: #{encoder_block_forward.1} parent=11 // pred_fallthru
        _
      // Predicated region
      $region25: #{encoder_block_forward.1} parent=11 // pred_check
        %p287 = pneg %p127
      $region26: #{encoder_block_forward.1} parent=11 // pred_check_branch
        %289 = sbr.rel (%p287) target = $region28
      $region27: #{encoder_block_forward.1} parent=11 // pred_region
        _
      $region28: #{encoder_block_forward.1} parent=11 // pred_fallthru
        _
      // Predicated region
      $region29: #{encoder_block_forward.1} parent=11 // pred_check
        %p290 = pneg %p148
      $region30: #{encoder_block_forward.1} parent=11 // pred_check_branch
        %292 = sbr.rel (%p290) target = $region32
      $region31: #{encoder_block_forward.1} parent=11 // pred_region
        _
      $region32: #{encoder_block_forward.1} parent=11 // pred_fallthru
        _
      // Predicated region
      $region33: #{encoder_block_forward.1} parent=11 // pred_check
        %p293 = pneg %p169
      $region34: #{encoder_block_forward.1} parent=11 // pred_check_branch
        %295 = sbr.rel (%p293) target = $region36
      $region35: #{encoder_block_forward.1} parent=11 // pred_region
        _
      $region36: #{encoder_block_forward.1} parent=11 // pred_fallthru
        _
      // Predicated region
      $region37: #{encoder_block_forward.1} parent=11 // pred_check
        %p296 = pneg %p190
      $region38: #{encoder_block_forward.1} parent=11 // pred_check_branch
        %298 = sbr.rel (%p296) target = $region40
      $region39: #{encoder_block_forward.1} parent=11 // pred_region
        _
      $region40: #{encoder_block_forward.1} parent=11 // pred_fallthru
        _
      // Predicated region
      $region41: #{encoder_block_forward.1} parent=11 // pred_check
        %p299 = pneg %p211
      $region42: #{encoder_block_forward.1} parent=11 // pred_check_branch
        %301 = sbr.rel (%p299) target = $region44
      $region43: #{encoder_block_forward.1} parent=11 // pred_region
        _
      $region44: #{encoder_block_forward.1} parent=11 // pred_fallthru
        _
    $region12: #{encoder_block_forward.1} parent=5 // pred_fallthru
      _
    %p302 = scmp.lt.s32.totalorder %s17, 2
    // Predicated region
    $region45: #{encoder_block_forward.1} parent=5 // pred_check
      %p303 = pneg %p302
    $region46: #{encoder_block_forward.1} parent=5 // pred_check_branch
      %305 = sbr.rel (%p303) target = $region48
    $region47: #{encoder_block_forward.1} parent=5 // pred_region
      // Predicated region
      $region49: #{encoder_block_forward.1} parent=47 // pred_check
        %p306 = pneg %p37
      $region50: #{encoder_block_forward.1} parent=47 // pred_check_branch
        %308 = sbr.rel (%p306) target = $region52
      $region51: #{encoder_block_forward.1} parent=47 // pred_region
        %p309 = scmp.lt.s32.totalorder %s17, 1
        %s310 = scalar_select %p309, %s17, 1
        %s311 = smul.addr %s310, 8
        %s312 = smul.addr %s311, 4
        %s313 = scalar_lea.vmem %s0, %s312
      $region52: #{encoder_block_forward.1} parent=47 // pred_fallthru
        _
    $region48: #{encoder_block_forward.1} parent=5 // pred_fallthru
      _
    %p314 = scmp.le.s32.totalorder 1, %s17
    %p315 = scmp.lt.s32.totalorder %s17, 3
    %p316 = pnand %p314, %p315
    %p317 = pneg %p316
    // Predicated region
    $region53: #{encoder_block_forward.1} parent=5 // pred_check
      _
    $region54: #{encoder_block_forward.1} parent=5 // pred_check_branch
      %319 = sbr.rel (%p316) target = $region56
    $region55: #{encoder_block_forward.1} parent=5 // pred_region
      %s320 = ssub.s32 %s17, 1
      %p321 = scmp.lt.s32.totalorder %s22, 1
      %s322 = scalar_select %p321, %s22, 1
      %s323 = smul.addr %s322, 8
      %s324 = smul.addr %s323, 4
      %s325 = scalar_lea.vmem %s0, %s324
      %p326 = pneg %p43
      %p327 = pneg %p40
      %p328 = pneg %p64
      %p329 = pneg %p61
      %p330 = pneg %p85
      %p331 = pneg %p82
      %p332 = pneg %p106
      %p333 = pneg %p103
      %p334 = pneg %p127
      %p335 = pneg %p124
      %p336 = pneg %p148
      %p337 = pneg %p145
      %p338 = pneg %p169
      %p339 = pneg %p166
      %p340 = pneg %p190
      %p341 = pneg %p187
      %p342 = pneg %p211
      %p343 = pneg %p208
      %p344 = pneg %p237
      %p345 = pneg %p234
      %p346 = scmp.lt.s32.totalorder %s22, 1
      %s347 = scalar_select %p346, %s22, 1
      %s348 = smul.addr %s347, 6
      %s349 = smul.addr %s348, 8
      %s350 = scalar_lea.vmem %s9, %s349
      %p351 = pneg %p263
      %p352 = pneg %p260
      %p353 = scmp.lt.s32.totalorder %s22, 1
      %s354 = scalar_select %p353, %s22, 1
      %s355 = smul.addr %s354, 8
      %s356 = scalar_lea.vmem %s10, %s355
      %p357 = scmp.lt.s32.totalorder %s22, 1
      %s358 = scalar_select %p357, %s22, 1
      %s359 = smul.addr %s358, 8
      %s360 = smul.addr %s359, 4
      %s361 = scalar_lea.vmem %s0, %s360
      %p362 = scmp.lt.s32.totalorder %s22, 1
      %s363 = scalar_select %p362, %s22, 1
      %s364 = smul.addr %s363, 6
      %s365 = smul.addr %s364, 8
      %s366 = scalar_lea.vmem %s9, %s365
      %p367 = scmp.lt.s32.totalorder %s22, 1
      %s368 = scalar_select %p367, %s22, 1
      %s369 = smul.addr %s368, 8
      %s370 = scalar_lea.vmem %s10, %s369
      %372 = vst [vmem:[#allocation2] sm:$0xff] 0.0
      %373 = vst [vmem:[#allocation2 + $0x38] sm:$0xff] 0.0
      %v374 = vld [vmem:[%s361] sm:$0xff]
      %v375 = vld [vmem:[%s361 + $0x8] sm:$0xff]
      %v376 = vld [vmem:[%s361 + $0x10] sm:$0xff]
      %v377 = vld [vmem:[%s361 + $0x18] sm:$0xf]
      %v378 = vld [vmem:[%s361 + $0x4] sm:$0xff]
      %v379 = vld [vmem:[%s361 + $0xc] sm:$0xff]
      %v380 = vld [vmem:[%s361 + $0x14] sm:$0xff]
      %v381 = vld [vmem:[%s361 + $0x4] sm:$0xff]
      %v382 = vld [vmem:[%s361 + $0xc] sm:$0xff]
      %v383 = vld [vmem:[%s361 + $0x14] sm:$0xff]
      %v384 = vld [vmem:[%s361 + $0x1c] sm:$0xf]
      %389 = vst [vmem:[#allocation1] ss:$2 sm:$0xff] %v374
      %s390 = scalar_lea.vmem [#allocation1], 16
      %391 = vst [vmem:[%s390] ss:$2 sm:$0xff] %v375
      %s392 = scalar_lea.vmem [#allocation1], 32
      %393 = vst [vmem:[%s392] ss:$2 sm:$0xff] %v376
      %s394 = scalar_lea.vmem [#allocation1], 48
      %395 = vst [vmem:[%s394] ss:$2 sm:$0xff] %v377
      %v396 = vld.sshfl [vmem:[#allocation1] sm:$0xff pattern:$0x75316420]
      %v397 = vld.sshfl [vmem:[#allocation1 + $0x8] sm:$0xff pattern:$0x75316420]
      %v398 = vld.sshfl [vmem:[#allocation1 + $0x10] sm:$0xff pattern:$0x75316420]
      %v399 = vld.sshfl [vmem:[#allocation1 + $0x18] sm:$0xff pattern:$0x75316420]
      %v400 = vld.sshfl [vmem:[#allocation1 + $0x20] sm:$0xff pattern:$0x75316420]
      %v401 = vld.sshfl [vmem:[#allocation1 + $0x28] sm:$0xff pattern:$0x75316420]
      %v402 = vld.sshfl [vmem:[#allocation1 + $0x30] sm:$0xff pattern:$0x75316420]
      %s410 = scalar_lea.vmem [#allocation1], 1
      %411 = vst [vmem:[%s410] ss:$2 sm:$0xff] %v374
      %s412 = scalar_lea.vmem [#allocation1], 17
      %413 = vst [vmem:[%s412] ss:$2 sm:$0xff] %v375
      %s414 = scalar_lea.vmem [#allocation1], 33
      %415 = vst [vmem:[%s414] ss:$2 sm:$0xff] %v376
      %s416 = scalar_lea.vmem [#allocation1], 49
      %417 = vst [vmem:[%s416] ss:$2 sm:$0xff] %v377
      %v418 = vld.sshfl [vmem:[#allocation1] sm:$0xff pattern:$0x75316420]
      %v419 = vld.sshfl [vmem:[#allocation1 + $0x8] sm:$0xff pattern:$0x75316420]
      %v420 = vld.sshfl [vmem:[#allocation1 + $0x10] sm:$0xff pattern:$0x75316420]
      %v421 = vld.sshfl [vmem:[#allocation1 + $0x18] sm:$0xff pattern:$0x75316420]
      %v422 = vld.sshfl [vmem:[#allocation1 + $0x20] sm:$0xff pattern:$0x75316420]
      %v423 = vld.sshfl [vmem:[#allocation1 + $0x28] sm:$0xff pattern:$0x75316420]
      %v424 = vld.sshfl [vmem:[#allocation1 + $0x30] sm:$0xff pattern:$0x75316420]
      %425 = vrot.lane.b32.xlu0 %v418, 127
      %v426 = vpop.permute.xlu0 %425
      %427 = vrot.lane.b32.xlu0 %v419, 127
      %v428 = vpop.permute.xlu0 %427
      %429 = vrot.lane.b32.xlu0 %v420, 127
      %v430 = vpop.permute.xlu0 %429
      %431 = vrot.lane.b32.xlu0 %v421, 127
      %v432 = vpop.permute.xlu0 %431
      %433 = vrot.lane.b32.xlu0 %v422, 127
      %v434 = vpop.permute.xlu0 %433
      %435 = vrot.lane.b32.xlu0 %v423, 127
      %v436 = vpop.permute.xlu0 %435
      %437 = vrot.lane.b32.xlu0 %v424, 127
      %v438 = vpop.permute.xlu0 %437
      %vm439 = vcmask 1039360
      %v440 = vsel %vm439, %v426, %v428
      %v441 = vsel %vm439, %v428, %v430
      %v442 = vsel %vm439, %v430, %v432
      %v443 = vsel %vm439, %v432, %v434
      %v444 = vsel %vm439, %v434, %v436
      %v445 = vsel %vm439, %v436, %v438
      %453 = vst [vmem:[#allocation1] ss:$2 sm:$0xff] %v374
      %s454 = scalar_lea.vmem [#allocation1], 16
      %455 = vst [vmem:[%s454] ss:$2 sm:$0xff] %v375
      %s456 = scalar_lea.vmem [#allocation1], 32
      %457 = vst [vmem:[%s456] ss:$2 sm:$0xff] %v376
      %s458 = scalar_lea.vmem [#allocation1], 48
      %459 = vst [vmem:[%s458] ss:$2 sm:$0xff] %v377
      %v460 = vld.sshfl [vmem:[#allocation1] sm:$0xff pattern:$0x75316420]
      %v461 = vld.sshfl [vmem:[#allocation1 + $0x8] sm:$0xff pattern:$0x75316420]
      %v462 = vld.sshfl [vmem:[#allocation1 + $0x10] sm:$0xff pattern:$0x75316420]
      %v463 = vld.sshfl [vmem:[#allocation1 + $0x18] sm:$0xff pattern:$0x75316420]
      %v464 = vld.sshfl [vmem:[#allocation1 + $0x20] sm:$0xff pattern:$0x75316420]
      %v465 = vld.sshfl [vmem:[#allocation1 + $0x28] sm:$0xff pattern:$0x75316420]
      %v466 = vld.sshfl [vmem:[#allocation1 + $0x30] sm:$0xff pattern:$0x75316420]
      %467 = vrot.lane.b32.xlu0 %v460, 126
      %v468 = vpop.permute.xlu0 %467
      %469 = vrot.lane.b32.xlu0 %v461, 126
      %v470 = vpop.permute.xlu0 %469
      %471 = vrot.lane.b32.xlu0 %v462, 126
      %v472 = vpop.permute.xlu0 %471
      %473 = vrot.lane.b32.xlu0 %v463, 126
      %v474 = vpop.permute.xlu0 %473
      %475 = vrot.lane.b32.xlu0 %v464, 126
      %v476 = vpop.permute.xlu0 %475
      %477 = vrot.lane.b32.xlu0 %v465, 126
      %v478 = vpop.permute.xlu0 %477
      %479 = vrot.lane.b32.xlu0 %v466, 126
      %v480 = vpop.permute.xlu0 %479
      %vm481 = vcmask 1031168
      %v482 = vsel %vm481, %v468, %v470
      %v483 = vsel %vm481, %v470, %v472
      %v484 = vsel %vm481, %v472, %v474
      %v485 = vsel %vm481, %v474, %v476
      %v486 = vsel %vm481, %v476, %v478
      %v487 = vsel %vm481, %v478, %v480
      %s495 = scalar_lea.vmem [#allocation1], 1
      %496 = vst [vmem:[%s495] ss:$2 sm:$0xff] %v374
      %s497 = scalar_lea.vmem [#allocation1], 17
      %498 = vst [vmem:[%s497] ss:$2 sm:$0xff] %v375
      %s499 = scalar_lea.vmem [#allocation1], 33
      %500 = vst [vmem:[%s499] ss:$2 sm:$0xff] %v376
      %s501 = scalar_lea.vmem [#allocation1], 49
      %502 = vst [vmem:[%s501] ss:$2 sm:$0xff] %v377
      %v503 = vld.sshfl [vmem:[#allocation1] sm:$0xff pattern:$0x75316420]
      %v504 = vld.sshfl [vmem:[#allocation1 + $0x8] sm:$0xff pattern:$0x75316420]
      %v505 = vld.sshfl [vmem:[#allocation1 + $0x10] sm:$0xff pattern:$0x75316420]
      %v506 = vld.sshfl [vmem:[#allocation1 + $0x18] sm:$0xff pattern:$0x75316420]
      %v507 = vld.sshfl [vmem:[#allocation1 + $0x20] sm:$0xff pattern:$0x75316420]
      %v508 = vld.sshfl [vmem:[#allocation1 + $0x28] sm:$0xff pattern:$0x75316420]
      %v509 = vld.sshfl [vmem:[#allocation1 + $0x30] sm:$0xff pattern:$0x75316420]
      %510 = vrot.lane.b32.xlu0 %v503, 110
      %v511 = vpop.permute.xlu0 %510
      %512 = vrot.lane.b32.xlu0 %v504, 110
      %v513 = vpop.permute.xlu0 %512
      %514 = vrot.lane.b32.xlu0 %v505, 110
      %v515 = vpop.permute.xlu0 %514
      %516 = vrot.lane.b32.xlu0 %v506, 110
      %v517 = vpop.permute.xlu0 %516
      %518 = vrot.lane.b32.xlu0 %v507, 110
      %v519 = vpop.permute.xlu0 %518
      %520 = vrot.lane.b32.xlu0 %v508, 110
      %v521 = vpop.permute.xlu0 %520
      %522 = vrot.lane.b32.xlu0 %v509, 110
      %v523 = vpop.permute.xlu0 %522
      %vm524 = vcmask 900096
      %v525 = vsel %vm524, %v511, %v513
      %v526 = vsel %vm524, %v513, %v515
      %v527 = vsel %vm524, %v515, %v517
      %v528 = vsel %vm524, %v517, %v519
      %v529 = vsel %vm524, %v519, %v521
      %v530 = vsel %vm524, %v521, %v523
      %541 = vst [vmem:[#allocation1] ss:$2 sm:$0xff] %v378
      %s542 = scalar_lea.vmem [#allocation1], 16
      %543 = vst [vmem:[%s542] ss:$2 sm:$0xff] %v379
      %s544 = scalar_lea.vmem [#allocation1], 32
      %545 = vst [vmem:[%s544] ss:$2 sm:$0xff] %v380
      %v546 = vld.sshfl [vmem:[#allocation1] sm:$0xff pattern:$0x75316420]
      %v547 = vld.sshfl [vmem:[#allocation1 + $0x8] sm:$0xff pattern:$0x75316420]
      %v548 = vld.sshfl [vmem:[#allocation1 + $0x10] sm:$0xff pattern:$0x75316420]
      %v549 = vld.sshfl [vmem:[#allocation1 + $0x18] sm:$0xff pattern:$0x75316420]
      %v550 = vld.sshfl [vmem:[#allocation1 + $0x20] sm:$0xff pattern:$0x75316420]
      %v551 = vld.sshfl [vmem:[#allocation1 + $0x28] sm:$0xff pattern:$0x75316420]
      %552 = vrot.lane.b32.xlu0 %v546, 109
      %v553 = vpop.permute.xlu0 %552
      %554 = vrot.lane.b32.xlu0 %v547, 109
      %v555 = vpop.permute.xlu0 %554
      %556 = vrot.lane.b32.xlu0 %v548, 109
      %v557 = vpop.permute.xlu0 %556
      %558 = vrot.lane.b32.xlu0 %v549, 109
      %v559 = vpop.permute.xlu0 %558
      %560 = vrot.lane.b32.xlu0 %v550, 109
      %v561 = vpop.permute.xlu0 %560
      %562 = vrot.lane.b32.xlu0 %v551, 109
      %v563 = vpop.permute.xlu0 %562
      %vm564 = vcmask 891904
      %v565 = vsel %vm564, %v553, %v555
      %v566 = vsel %vm564, %v555, %v557
      %v567 = vsel %vm564, %v557, %v559
      %v568 = vsel %vm564, %v559, %v561
      %v569 = vsel %vm564, %v561, %v563
      %s581 = scalar_lea.vmem [#allocation1], 1
      %582 = vst [vmem:[%s581] ss:$2 sm:$0xff] %v381
      %s583 = scalar_lea.vmem [#allocation1], 17
      %584 = vst [vmem:[%s583] ss:$2 sm:$0xff] %v382
      %s585 = scalar_lea.vmem [#allocation1], 33
      %586 = vst [vmem:[%s585] ss:$2 sm:$0xff] %v383
      %s587 = scalar_lea.vmem [#allocation1], 49
      %588 = vst [vmem:[%s587] ss:$2 sm:$0xff] %v384
      %v589 = vld.sshfl [vmem:[#allocation1] sm:$0xff pattern:$0x75316420]
      %v590 = vld.sshfl [vmem:[#allocation1 + $0x8] sm:$0xff pattern:$0x75316420]
      %v591 = vld.sshfl [vmem:[#allocation1 + $0x10] sm:$0xff pattern:$0x75316420]
      %v592 = vld.sshfl [vmem:[#allocation1 + $0x18] sm:$0xff pattern:$0x75316420]
      %v593 = vld.sshfl [vmem:[#allocation1 + $0x20] sm:$0xff pattern:$0x75316420]
      %v594 = vld.sshfl [vmem:[#allocation1 + $0x28] sm:$0xff pattern:$0x75316420]
      %v595 = vld.sshfl [vmem:[#allocation1 + $0x30] sm:$0xff pattern:$0x75316420]
      %596 = vrot.lane.b32.xlu0 %v589, 108
      %v597 = vpop.permute.xlu0 %596
      %598 = vrot.lane.b32.xlu0 %v590, 108
      %v599 = vpop.permute.xlu0 %598
      %600 = vrot.lane.b32.xlu0 %v591, 108
      %v601 = vpop.permute.xlu0 %600
      %602 = vrot.lane.b32.xlu0 %v592, 108
      %v603 = vpop.permute.xlu0 %602
      %604 = vrot.lane.b32.xlu0 %v593, 108
      %v605 = vpop.permute.xlu0 %604
      %606 = vrot.lane.b32.xlu0 %v594, 108
      %v607 = vpop.permute.xlu0 %606
      %608 = vrot.lane.b32.xlu0 %v595, 108
      %v609 = vpop.permute.xlu0 %608
      %vm610 = vcmask 883712
      %v611 = vsel %vm610, %v597, %v599
      %v612 = vsel %vm610, %v599, %v601
      %v613 = vsel %vm610, %v601, %v603
      %v614 = vsel %vm610, %v603, %v605
      %v615 = vsel %vm610, %v605, %v607
      %v616 = vsel %vm610, %v607, %v609
      %624 = vst [vmem:[#allocation1] ss:$2 sm:$0xff] %v381
      %s625 = scalar_lea.vmem [#allocation1], 16
      %626 = vst [vmem:[%s625] ss:$2 sm:$0xff] %v382
      %s627 = scalar_lea.vmem [#allocation1], 32
      %628 = vst [vmem:[%s627] ss:$2 sm:$0xff] %v383
      %s629 = scalar_lea.vmem [#allocation1], 48
      %630 = vst [vmem:[%s629] ss:$2 sm:$0xff] %v384
      %v631 = vld.sshfl [vmem:[#allocation1] sm:$0xff pattern:$0x75316420]
      %v632 = vld.sshfl [vmem:[#allocation1 + $0x8] sm:$0xff pattern:$0x75316420]
      %v633 = vld.sshfl [vmem:[#allocation1 + $0x10] sm:$0xff pattern:$0x75316420]
      %v634 = vld.sshfl [vmem:[#allocation1 + $0x18] sm:$0xff pattern:$0x75316420]
      %v635 = vld.sshfl [vmem:[#allocation1 + $0x20] sm:$0xff pattern:$0x75316420]
      %v636 = vld.sshfl [vmem:[#allocation1 + $0x28] sm:$0xff pattern:$0x75316420]
      %v637 = vld.sshfl [vmem:[#allocation1 + $0x30] sm:$0xff pattern:$0x75316420]
      %638 = vrot.lane.b32.xlu0 %v631, 92
      %v639 = vpop.permute.xlu0 %638
      %640 = vrot.lane.b32.xlu0 %v632, 92
      %v641 = vpop.permute.xlu0 %640
      %642 = vrot.lane.b32.xlu0 %v633, 92
      %v643 = vpop.permute.xlu0 %642
      %644 = vrot.lane.b32.xlu0 %v634, 92
      %v645 = vpop.permute.xlu0 %644
      %646 = vrot.lane.b32.xlu0 %v635, 92
      %v647 = vpop.permute.xlu0 %646
      %648 = vrot.lane.b32.xlu0 %v636, 92
      %v649 = vpop.permute.xlu0 %648
      %650 = vrot.lane.b32.xlu0 %v637, 92
      %v651 = vpop.permute.xlu0 %650
      %vm652 = vcmask 752640
      %v653 = vsel %vm652, %v639, %v641
      %v654 = vsel %vm652, %v641, %v643
      %v655 = vsel %vm652, %v643, %v645
      %v656 = vsel %vm652, %v645, %v647
      %v657 = vsel %vm652, %v647, %v649
      %v658 = vsel %vm652, %v649, %v651
      %s666 = scalar_lea.vmem [#allocation1], 1
      %667 = vst [vmem:[%s666] ss:$2 sm:$0xff] %v381
      %s668 = scalar_lea.vmem [#allocation1], 17
      %669 = vst [vmem:[%s668] ss:$2 sm:$0xff] %v382
      %s670 = scalar_lea.vmem [#allocation1], 33
      %671 = vst [vmem:[%s670] ss:$2 sm:$0xff] %v383
      %s672 = scalar_lea.vmem [#allocation1], 49
      %673 = vst [vmem:[%s672] ss:$2 sm:$0xff] %v384
      %v674 = vld.sshfl [vmem:[#allocation1] sm:$0xff pattern:$0x75316420]
      %v675 = vld.sshfl [vmem:[#allocation1 + $0x8] sm:$0xff pattern:$0x75316420]
      %v676 = vld.sshfl [vmem:[#allocation1 + $0x10] sm:$0xff pattern:$0x75316420]
      %v677 = vld.sshfl [vmem:[#allocation1 + $0x18] sm:$0xff pattern:$0x75316420]
      %v678 = vld.sshfl [vmem:[#allocation1 + $0x20] sm:$0xff pattern:$0x75316420]
      %v679 = vld.sshfl [vmem:[#allocation1 + $0x28] sm:$0xff pattern:$0x75316420]
      %v680 = vld.sshfl [vmem:[#allocation1 + $0x30] sm:$0xff pattern:$0x75316420]
      %681 = vrot.lane.b32.xlu0 %v674, 91
      %v682 = vpop.permute.xlu0 %681
      %683 = vrot.lane.b32.xlu0 %v675, 91
      %v684 = vpop.permute.xlu0 %683
      %685 = vrot.lane.b32.xlu0 %v676, 91
      %v686 = vpop.permute.xlu0 %685
      %687 = vrot.lane.b32.xlu0 %v677, 91
      %v688 = vpop.permute.xlu0 %687
      %689 = vrot.lane.b32.xlu0 %v678, 91
      %v690 = vpop.permute.xlu0 %689
      %691 = vrot.lane.b32.xlu0 %v679, 91
      %v692 = vpop.permute.xlu0 %691
      %693 = vrot.lane.b32.xlu0 %v680, 91
      %v694 = vpop.permute.xlu0 %693
      %vm695 = vcmask 744448
      %v696 = vsel %vm695, %v682, %v684
      %v697 = vsel %vm695, %v684, %v686
      %v698 = vsel %vm695, %v686, %v688
      %v699 = vsel %vm695, %v688, %v690
      %v700 = vsel %vm695, %v690, %v692
      %v701 = vsel %vm695, %v692, %v694
      %709 = vst [vmem:[#allocation1] ss:$2 sm:$0xff] %v381
      %s710 = scalar_lea.vmem [#allocation1], 16
      %711 = vst [vmem:[%s710] ss:$2 sm:$0xff] %v382
      %s712 = scalar_lea.vmem [#allocation1], 32
      %713 = vst [vmem:[%s712] ss:$2 sm:$0xff] %v383
      %s714 = scalar_lea.vmem [#allocation1], 48
      %715 = vst [vmem:[%s714] ss:$2 sm:$0xff] %v384
      %v716 = vld.sshfl [vmem:[#allocation1] sm:$0xff pattern:$0x75316420]
      %v717 = vld.sshfl [vmem:[#allocation1 + $0x8] sm:$0xff pattern:$0x75316420]
      %v718 = vld.sshfl [vmem:[#allocation1 + $0x10] sm:$0xff pattern:$0x75316420]
      %v719 = vld.sshfl [vmem:[#allocation1 + $0x18] sm:$0xff pattern:$0x75316420]
      %v720 = vld.sshfl [vmem:[#allocation1 + $0x20] sm:$0xff pattern:$0x75316420]
      %v721 = vld.sshfl [vmem:[#allocation1 + $0x28] sm:$0xff pattern:$0x75316420]
      %v722 = vld.sshfl [vmem:[#allocation1 + $0x30] sm:$0xff pattern:$0x75316420]
      %723 = vrot.lane.b32.xlu0 %v716, 90
      %v724 = vpop.permute.xlu0 %723
      %725 = vrot.lane.b32.xlu0 %v717, 90
      %v726 = vpop.permute.xlu0 %725
      %727 = vrot.lane.b32.xlu0 %v718, 90
      %v728 = vpop.permute.xlu0 %727
      %729 = vrot.lane.b32.xlu0 %v719, 90
      %v730 = vpop.permute.xlu0 %729
      %731 = vrot.lane.b32.xlu0 %v720, 90
      %v732 = vpop.permute.xlu0 %731
      %733 = vrot.lane.b32.xlu0 %v721, 90
      %v734 = vpop.permute.xlu0 %733
      %735 = vrot.lane.b32.xlu0 %v722, 90
      %v736 = vpop.permute.xlu0 %735
      %vm737 = vcmask 736256
      %v738 = vsel %vm737, %v724, %v726
      %v739 = vsel %vm737, %v726, %v728
      %v740 = vsel %vm737, %v728, %v730
      %v741 = vsel %vm737, %v730, %v732
      %v742 = vsel %vm737, %v732, %v734
      %v743 = vsel %vm737, %v734, %v736
      %vm751 = vcmask 1043456
      %v752 = vsel %vm751, %v396, %v440
      %v753 = vsel %vm751, %v397, %v441
      %v754 = vsel %vm751, %v398, %v442
      %v755 = vsel %vm751, %v399, %v443
      %v756 = vsel %vm751, %v400, %v444
      %v757 = vsel %vm751, %v401, %v445
      %v758 = vsel %vm751, %v402, %v438
      %v759 = vsel %vm751, %v482, %v525
      %v760 = vsel %vm751, %v483, %v526
      %v761 = vsel %vm751, %v484, %v527
      %v762 = vsel %vm751, %v485, %v528
      %v763 = vsel %vm751, %v486, %v529
      %v764 = vsel %vm751, %v487, %v530
      %v765 = vsel %vm751, %v480, %v523
      %v766 = vsel %vm751, %v553, %v597
      %v767 = vsel %vm751, %v565, %v611
      %v768 = vsel %vm751, %v566, %v612
      %v769 = vsel %vm751, %v567, %v613
      %v770 = vsel %vm751, %v568, %v614
      %v771 = vsel %vm751, %v569, %v615
      %v772 = vsel %vm751, %v563, %v616
      %v773 = vsel %vm751, %v639, %v682
      %v774 = vsel %vm751, %v653, %v696
      %v775 = vsel %vm751, %v654, %v697
      %v776 = vsel %vm751, %v655, %v698
      %v777 = vsel %vm751, %v656, %v699
      %v778 = vsel %vm751, %v657, %v700
      %v779 = vsel %vm751, %v658, %v701
      %v780 = vld [vmem:[%s1] sm:$0xf]
      %v781 = vpack.c.bf16 %v759, %v752
      %v782 = vpack.c.bf16 %v760, %v753
      %v783 = vpack.c.bf16 %v761, %v754
      %v784 = vpack.c.bf16 %v762, %v755
      %v785 = vpack.c.bf16 %v763, %v756
      %v786 = vpack.c.bf16 %v764, %v757
      %v787 = vpack.c.bf16 %v765, %v758
      %v788 = vpack.c.bf16 %v773, %v766
      %v789 = vpack.c.bf16 %v774, %v767
      %v790 = vpack.c.bf16 %v775, %v768
      %v791 = vpack.c.bf16 %v776, %v769
      %v792 = vpack.c.bf16 %v777, %v770
      %v793 = vpack.c.bf16 %v778, %v771
      %v794 = vpack.c.bf16 %v779, %v772
      %v795 = vpack.c.bf16 %v724, %v724
      %v796 = vpack.c.bf16 %v738, %v738
      %v797 = vpack.c.bf16 %v739, %v739
      %v798 = vpack.c.bf16 %v740, %v740
      %v799 = vpack.c.bf16 %v741, %v741
      %v800 = vpack.c.bf16 %v742, %v742
      %v801 = vpack.c.bf16 %v743, %v743
      %823 = vrot.lane.b32.xlu0 %v781, 19
      %v824 = vpop.permute.xlu0 %823
      %825 = vrot.lane.b32.xlu0 %v782, 19
      %v826 = vpop.permute.xlu0 %825
      %827 = vrot.lane.b32.xlu0 %v783, 19
      %v828 = vpop.permute.xlu0 %827
      %829 = vrot.lane.b32.xlu0 %v784, 19
      %v830 = vpop.permute.xlu0 %829
      %831 = vrot.lane.b32.xlu0 %v785, 19
      %v832 = vpop.permute.xlu0 %831
      %833 = vrot.lane.b32.xlu0 %v786, 19
      %v834 = vpop.permute.xlu0 %833
      %835 = vrot.lane.b32.xlu0 %v787, 19
      %v836 = vpop.permute.xlu0 %835
      %837 = vrot.lane.b32.xlu0 %v788, 19
      %v838 = vpop.permute.xlu0 %837
      %839 = vrot.lane.b32.xlu0 %v789, 19
      %v840 = vpop.permute.xlu0 %839
      %841 = vrot.lane.b32.xlu0 %v790, 19
      %v842 = vpop.permute.xlu0 %841
      %843 = vrot.lane.b32.xlu0 %v791, 19
      %v844 = vpop.permute.xlu0 %843
      %845 = vrot.lane.b32.xlu0 %v792, 19
      %v846 = vpop.permute.xlu0 %845
      %847 = vrot.lane.b32.xlu0 %v793, 19
      %v848 = vpop.permute.xlu0 %847
      %849 = vrot.lane.b32.xlu0 %v794, 19
      %v850 = vpop.permute.xlu0 %849
      %851 = vrot.lane.b32.xlu0 %v795, 19
      %v852 = vpop.permute.xlu0 %851
      %853 = vrot.lane.b32.xlu0 %v796, 19
      %v854 = vpop.permute.xlu0 %853
      %855 = vrot.lane.b32.xlu0 %v797, 19
      %v856 = vpop.permute.xlu0 %855
      %857 = vrot.lane.b32.xlu0 %v798, 19
      %v858 = vpop.permute.xlu0 %857
      %859 = vrot.lane.b32.xlu0 %v799, 19
      %v860 = vpop.permute.xlu0 %859
      %861 = vrot.lane.b32.xlu0 %v800, 19
      %v862 = vpop.permute.xlu0 %861
      %863 = vrot.lane.b32.xlu0 %v801, 19
      %v864 = vpop.permute.xlu0 %863
      %vm865 = vcmask 154624
      %v866 = vsel %vm865, %v824, %v826
      %v867 = vsel %vm865, %v826, %v828
      %v868 = vsel %vm865, %v828, %v830
      %v869 = vsel %vm865, %v830, %v832
      %v870 = vsel %vm865, %v832, %v834
      %v871 = vsel %vm865, %v834, %v836
      %v872 = vsel %vm865, %v838, %v840
      %v873 = vsel %vm865, %v840, %v842
      %v874 = vsel %vm865, %v842, %v844
      %v875 = vsel %vm865, %v844, %v846
      %v876 = vsel %vm865, %v846, %v848
      %v877 = vsel %vm865, %v848, %v850
      %v878 = vsel %vm865, %v852, %v854
      %v879 = vsel %vm865, %v854, %v856
      %v880 = vsel %vm865, %v856, %v858
      %v881 = vsel %vm865, %v858, %v860
      %v882 = vsel %vm865, %v860, %v862
      %v883 = vsel %vm865, %v862, %v864
      %vm896 = vcmask 293888
      %v898 = vsel %vm896, %v780, 0
      %vm900 = vcmask 1041408
      %v902 = vsel %vm900, %v878, 0
      %v905 = vsel %vm900, %v879, 0
      %v908 = vsel %vm900, %v880, 0
      %v911 = vsel %vm900, %v881, 0
      %v914 = vsel %vm900, %v882, 0
      %v917 = vsel %vm900, %v883, 0
      %919 = vmatpush.bf16.msra.mxu0 0
      %920 = vmatpush.bf16.msra.mxu0 0
      %921 = vmatpush.bf16.msra.mxu0 0
      %922 = vmatpush.bf16.msra.mxu0 0
      %923 = vmatpush.bf16.msra.mxu0 0
      %924 = vmatpush.bf16.msra.mxu0 %v902
      %925 = vmatpush.bf16.msra.mxu0 %v872
      %926 = vmatpush.bf16.msra.mxu0 %v866
      %927 = vmatmul.bf16.gmra.mxu0 %v898
      %v928 = vpop.f32.mrf.mxu0
      %v929 = vadd.f32 0.0, %v928
      %v930 = vpop.f32.mrf.mxu0
      %931 = vdwg.mxu0
      %932 = vmatpush.bf16.msra.mxu0 0
      %933 = vmatpush.bf16.msra.mxu0 0
      %934 = vmatpush.bf16.msra.mxu0 0
      %935 = vmatpush.bf16.msra.mxu0 0
      %936 = vmatpush.bf16.msra.mxu0 0
      %937 = vmatpush.bf16.msra.mxu0 %v905
      %938 = vmatpush.bf16.msra.mxu0 %v873
      %939 = vmatpush.bf16.msra.mxu0 %v867
      %940 = vmatmul.bf16.gmra.mxu0 %v898
      %v941 = vpop.f32.mrf.mxu0
      %v942 = vadd.f32 0.0, %v941
      %v943 = vpop.f32.mrf.mxu0
      %944 = vdwg.mxu0
      %945 = vmatpush.bf16.msra.mxu0 0
      %946 = vmatpush.bf16.msra.mxu0 0
      %947 = vmatpush.bf16.msra.mxu0 0
      %948 = vmatpush.bf16.msra.mxu0 0
      %949 = vmatpush.bf16.msra.mxu0 0
      %950 = vmatpush.bf16.msra.mxu0 %v908
      %951 = vmatpush.bf16.msra.mxu0 %v874
      %952 = vmatpush.bf16.msra.mxu0 %v868
      %953 = vmatmul.bf16.gmra.mxu0 %v898
      %v954 = vpop.f32.mrf.mxu0
      %v955 = vadd.f32 0.0, %v954
      %v956 = vpop.f32.mrf.mxu0
      %957 = vdwg.mxu0
      %958 = vmatpush.bf16.msra.mxu0 0
      %959 = vmatpush.bf16.msra.mxu0 0
      %960 = vmatpush.bf16.msra.mxu0 0
      %961 = vmatpush.bf16.msra.mxu0 0
      %962 = vmatpush.bf16.msra.mxu0 0
      %963 = vmatpush.bf16.msra.mxu0 %v911
      %964 = vmatpush.bf16.msra.mxu0 %v875
      %965 = vmatpush.bf16.msra.mxu0 %v869
      %966 = vmatmul.bf16.gmra.mxu0 %v898
      %v967 = vpop.f32.mrf.mxu0
      %v968 = vadd.f32 0.0, %v967
      %v969 = vpop.f32.mrf.mxu0
      %970 = vdwg.mxu0
      %971 = vmatpush.bf16.msra.mxu0 0
      %972 = vmatpush.bf16.msra.mxu0 0
      %973 = vmatpush.bf16.msra.mxu0 0
      %974 = vmatpush.bf16.msra.mxu0 0
      %975 = vmatpush.bf16.msra.mxu0 0
      %976 = vmatpush.bf16.msra.mxu0 %v914
      %977 = vmatpush.bf16.msra.mxu0 %v876
      %978 = vmatpush.bf16.msra.mxu0 %v870
      %979 = vmatmul.bf16.gmra.mxu0 %v898
      %v980 = vpop.f32.mrf.mxu0
      %v981 = vadd.f32 0.0, %v980
      %v982 = vpop.f32.mrf.mxu0
      %983 = vdwg.mxu0
      %984 = vmatpush.bf16.msra.mxu0 0
      %985 = vmatpush.bf16.msra.mxu0 0
      %986 = vmatpush.bf16.msra.mxu0 0
      %987 = vmatpush.bf16.msra.mxu0 0
      %988 = vmatpush.bf16.msra.mxu0 0
      %989 = vmatpush.bf16.msra.mxu0 %v917
      %990 = vmatpush.bf16.msra.mxu0 %v877
      %991 = vmatpush.bf16.msra.mxu0 %v871
      %992 = vmatmul.bf16.gmra.mxu0 %v898
      %v993 = vpop.f32.mrf.mxu0
      %v994 = vadd.f32 0.0, %v993
      %v995 = vpop.f32.mrf.mxu0
      %996 = vdwg.mxu0
      %v997 = vld [vmem:[%s2] sm:$0xff]
      %999 = vset.pattern.permute.xlu0 0
      %1000 = vperm.xlu0 %999, %v997
      %v1001 = vpop.permute.xlu0 %1000
      %v1003 = vmul.f32 %v929, %v1001
      %v1004 = vmul.f32 %v942, %v1001
      %v1005 = vmul.f32 %v955, %v1001
      %v1006 = vmul.f32 %v968, %v1001
      %v1007 = vmul.f32 %v981, %v1001
      %v1008 = vmul.f32 %v994, %v1001
      %v1009 = vld [vmem:[%s3] sm:$0xff]
      %1011 = vset.pattern.permute.xlu0 0
      %1012 = vperm.xlu0 %1011, %v1009
      %v1013 = vpop.permute.xlu0 %1012
      %v1015 = vadd.f32 %v1003, %v1013
      %v1016 = vadd.f32 %v1004, %v1013
      %v1017 = vadd.f32 %v1005, %v1013
      %v1018 = vadd.f32 %v1006, %v1013
      %v1019 = vadd.f32 %v1007, %v1013
      %v1020 = vadd.f32 %v1008, %v1013
      %v1021 = vmax.f32 %v1015, 0.0
      %v1022 = vmax.f32 %v1016, 0.0
      %v1023 = vmax.f32 %v1017, 0.0
      %v1024 = vmax.f32 %v1018, 0.0
      %v1025 = vmax.f32 %v1019, 0.0
      %v1026 = vmax.f32 %v1020, 0.0
      %v1027 = vld [vmem:[%s7] sm:$0x3f]
      %v1029 = vperm.slane %v1027, 0
      %v1030 = vperm.slane %v1027, 1
      %v1031 = vperm.slane %v1027, 2
      %v1032 = vperm.slane %v1027, 3
      %v1033 = vperm.slane %v1027, 4
      %v1034 = vperm.slane %v1027, 5
      %v1041 = vmul.f32 %v1021, %v1029
      %v1042 = vmul.f32 %v1022, %v1030
      %v1043 = vmul.f32 %v1023, %v1031
      %v1044 = vmul.f32 %v1024, %v1032
      %v1045 = vmul.f32 %v1025, %v1033
      %v1046 = vmul.f32 %v1026, %v1034
      %1047 = vst [vmem:[#allocation2 + $0x8] sm:$0xff] %v1041
      %1048 = vst [vmem:[#allocation2 + $0x10] sm:$0xff] %v1042
      %1049 = vst [vmem:[#allocation2 + $0x18] sm:$0xff] %v1043
      %1050 = vst [vmem:[#allocation2 + $0x20] sm:$0xff] %v1044
      %1051 = vst [vmem:[#allocation2 + $0x28] sm:$0xff] %v1045
      %1052 = vst [vmem:[#allocation2 + $0x30] sm:$0xff] %v1046
      %v1053 = vld [vmem:[#allocation2] sm:$0xff]
      %v1054 = vld [vmem:[#allocation2 + $0x8] sm:$0xff]
      %v1055 = vld [vmem:[#allocation2 + $0x10] sm:$0xff]
      %v1056 = vld [vmem:[#allocation2 + $0x18] sm:$0xff]
      %v1057 = vld [vmem:[#allocation2 + $0x20] sm:$0xff]
      %v1058 = vld [vmem:[#allocation2 + $0x28] sm:$0xff]
      %v1059 = vld [vmem:[#allocation2 + $0x30] sm:$0xff]
      %v1060 = vld [vmem:[#allocation2 + $0x8] sm:$0xff]
      %v1061 = vld [vmem:[#allocation2 + $0x10] sm:$0xff]
      %v1062 = vld [vmem:[#allocation2 + $0x18] sm:$0xff]
      %v1063 = vld [vmem:[#allocation2 + $0x20] sm:$0xff]
      %v1064 = vld [vmem:[#allocation2 + $0x28] sm:$0xff]
      %v1065 = vld [vmem:[#allocation2 + $0x30] sm:$0xff]
      %v1066 = vld [vmem:[#allocation2 + $0x38] sm:$0xff]
      %1074 = vrot.lane.b32.xlu0 %v1053, 127
      %v1075 = vpop.permute.xlu0 %1074
      %1076 = vrot.lane.b32.xlu0 %v1054, 127
      %v1077 = vpop.permute.xlu0 %1076
      %1078 = vrot.lane.b32.xlu0 %v1055, 127
      %v1079 = vpop.permute.xlu0 %1078
      %1080 = vrot.lane.b32.xlu0 %v1056, 127
      %v1081 = vpop.permute.xlu0 %1080
      %1082 = vrot.lane.b32.xlu0 %v1057, 127
      %v1083 = vpop.permute.xlu0 %1082
      %1084 = vrot.lane.b32.xlu0 %v1058, 127
      %v1085 = vpop.permute.xlu0 %1084
      %1086 = vrot.lane.b32.xlu0 %v1059, 127
      %v1087 = vpop.permute.xlu0 %1086
      %v1088 = vsel %vm439, %v1075, %v1077
      %v1089 = vsel %vm439, %v1077, %v1079
      %v1090 = vsel %vm439, %v1079, %v1081
      %v1091 = vsel %vm439, %v1081, %v1083
      %v1092 = vsel %vm439, %v1083, %v1085
      %v1093 = vsel %vm439, %v1085, %v1087
      %1101 = vrot.lane.b32.xlu0 %v1053, 126
      %v1102 = vpop.permute.xlu0 %1101
      %1103 = vrot.lane.b32.xlu0 %v1054, 126
      %v1104 = vpop.permute.xlu0 %1103
      %1105 = vrot.lane.b32.xlu0 %v1055, 126
      %v1106 = vpop.permute.xlu0 %1105
      %1107 = vrot.lane.b32.xlu0 %v1056, 126
      %v1108 = vpop.permute.xlu0 %1107
      %1109 = vrot.lane.b32.xlu0 %v1057, 126
      %v1110 = vpop.permute.xlu0 %1109
      %1111 = vrot.lane.b32.xlu0 %v1058, 126
      %v1112 = vpop.permute.xlu0 %1111
      %1113 = vrot.lane.b32.xlu0 %v1059, 126
      %v1114 = vpop.permute.xlu0 %1113
      %v1115 = vsel %vm481, %v1102, %v1104
      %v1116 = vsel %vm481, %v1104, %v1106
      %v1117 = vsel %vm481, %v1106, %v1108
      %v1118 = vsel %vm481, %v1108, %v1110
      %v1119 = vsel %vm481, %v1110, %v1112
      %v1120 = vsel %vm481, %v1112, %v1114
      %1128 = vrot.lane.b32.xlu0 %v1053, 110
      %v1129 = vpop.permute.xlu0 %1128
      %1130 = vrot.lane.b32.xlu0 %v1054, 110
      %v1131 = vpop.permute.xlu0 %1130
      %1132 = vrot.lane.b32.xlu0 %v1055, 110
      %v1133 = vpop.permute.xlu0 %1132
      %1134 = vrot.lane.b32.xlu0 %v1056, 110
      %v1135 = vpop.permute.xlu0 %1134
      %1136 = vrot.lane.b32.xlu0 %v1057, 110
      %v1137 = vpop.permute.xlu0 %1136
      %1138 = vrot.lane.b32.xlu0 %v1058, 110
      %v1139 = vpop.permute.xlu0 %1138
      %1140 = vrot.lane.b32.xlu0 %v1059, 110
      %v1141 = vpop.permute.xlu0 %1140
      %v1142 = vsel %vm524, %v1129, %v1131
      %v1143 = vsel %vm524, %v1131, %v1133
      %v1144 = vsel %vm524, %v1133, %v1135
      %v1145 = vsel %vm524, %v1135, %v1137
      %v1146 = vsel %vm524, %v1137, %v1139
      %v1147 = vsel %vm524, %v1139, %v1141
      %1155 = vrot.lane.b32.xlu0 %v1054, 109
      %v1156 = vpop.permute.xlu0 %1155
      %1157 = vrot.lane.b32.xlu0 %v1055, 109
      %v1158 = vpop.permute.xlu0 %1157
      %1159 = vrot.lane.b32.xlu0 %v1056, 109
      %v1160 = vpop.permute.xlu0 %1159
      %1161 = vrot.lane.b32.xlu0 %v1057, 109
      %v1162 = vpop.permute.xlu0 %1161
      %1163 = vrot.lane.b32.xlu0 %v1058, 109
      %v1164 = vpop.permute.xlu0 %1163
      %1165 = vrot.lane.b32.xlu0 %v1059, 109
      %v1166 = vpop.permute.xlu0 %1165
      %v1167 = vsel %vm564, %v1156, %v1158
      %v1168 = vsel %vm564, %v1158, %v1160
      %v1169 = vsel %vm564, %v1160, %v1162
      %v1170 = vsel %vm564, %v1162, %v1164
      %v1171 = vsel %vm564, %v1164, %v1166
      %1186 = vrot.lane.b32.xlu0 %v1060, 108
      %v1187 = vpop.permute.xlu0 %1186
      %1188 = vrot.lane.b32.xlu0 %v1061, 108
      %v1189 = vpop.permute.xlu0 %1188
      %1190 = vrot.lane.b32.xlu0 %v1062, 108
      %v1191 = vpop.permute.xlu0 %1190
      %1192 = vrot.lane.b32.xlu0 %v1063, 108
      %v1193 = vpop.permute.xlu0 %1192
      %1194 = vrot.lane.b32.xlu0 %v1064, 108
      %v1195 = vpop.permute.xlu0 %1194
      %1196 = vrot.lane.b32.xlu0 %v1065, 108
      %v1197 = vpop.permute.xlu0 %1196
      %1198 = vrot.lane.b32.xlu0 %v1066, 108
      %v1199 = vpop.permute.xlu0 %1198
      %v1200 = vsel %vm610, %v1187, %v1189
      %v1201 = vsel %vm610, %v1189, %v1191
      %v1202 = vsel %vm610, %v1191, %v1193
      %v1203 = vsel %vm610, %v1193, %v1195
      %v1204 = vsel %vm610, %v1195, %v1197
      %v1205 = vsel %vm610, %v1197, %v1199
      %1213 = vrot.lane.b32.xlu0 %v1060, 92
      %v1214 = vpop.permute.xlu0 %1213
      %1215 = vrot.lane.b32.xlu0 %v1061, 92
      %v1216 = vpop.permute.xlu0 %1215
      %1217 = vrot.lane.b32.xlu0 %v1062, 92
      %v1218 = vpop.permute.xlu0 %1217
      %1219 = vrot.lane.b32.xlu0 %v1063, 92
      %v1220 = vpop.permute.xlu0 %1219
      %1221 = vrot.lane.b32.xlu0 %v1064, 92
      %v1222 = vpop.permute.xlu0 %1221
      %1223 = vrot.lane.b32.xlu0 %v1065, 92
      %v1224 = vpop.permute.xlu0 %1223
      %1225 = vrot.lane.b32.xlu0 %v1066, 92
      %v1226 = vpop.permute.xlu0 %1225
      %v1227 = vsel %vm652, %v1214, %v1216
      %v1228 = vsel %vm652, %v1216, %v1218
      %v1229 = vsel %vm652, %v1218, %v1220
      %v1230 = vsel %vm652, %v1220, %v1222
      %v1231 = vsel %vm652, %v1222, %v1224
      %v1232 = vsel %vm652, %v1224, %v1226
      %1240 = vrot.lane.b32.xlu0 %v1060, 91
      %v1241 = vpop.permute.xlu0 %1240
      %1242 = vrot.lane.b32.xlu0 %v1061, 91
      %v1243 = vpop.permute.xlu0 %1242
      %1244 = vrot.lane.b32.xlu0 %v1062, 91
      %v1245 = vpop.permute.xlu0 %1244
      %1246 = vrot.lane.b32.xlu0 %v1063, 91
      %v1247 = vpop.permute.xlu0 %1246
      %1248 = vrot.lane.b32.xlu0 %v1064, 91
      %v1249 = vpop.permute.xlu0 %1248
      %1250 = vrot.lane.b32.xlu0 %v1065, 91
      %v1251 = vpop.permute.xlu0 %1250
      %1252 = vrot.lane.b32.xlu0 %v1066, 91
      %v1253 = vpop.permute.xlu0 %1252
      %v1254 = vsel %vm695, %v1241, %v1243
      %v1255 = vsel %vm695, %v1243, %v1245
      %v1256 = vsel %vm695, %v1245, %v1247
      %v1257 = vsel %vm695, %v1247, %v1249
      %v1258 = vsel %vm695, %v1249, %v1251
      %v1259 = vsel %vm695, %v1251, %v1253
      %1267 = vrot.lane.b32.xlu0 %v1060, 90
      %v1268 = vpop.permute.xlu0 %1267
      %1269 = vrot.lane.b32.xlu0 %v1061, 90
      %v1270 = vpop.permute.xlu0 %1269
      %1271 = vrot.lane.b32.xlu0 %v1062, 90
      %v1272 = vpop.permute.xlu0 %1271
      %1273 = vrot.lane.b32.xlu0 %v1063, 90
      %v1274 = vpop.permute.xlu0 %1273
      %1275 = vrot.lane.b32.xlu0 %v1064, 90
      %v1276 = vpop.permute.xlu0 %1275
      %1277 = vrot.lane.b32.xlu0 %v1065, 90
      %v1278 = vpop.permute.xlu0 %1277
      %1279 = vrot.lane.b32.xlu0 %v1066, 90
      %v1280 = vpop.permute.xlu0 %1279
      %v1281 = vsel %vm737, %v1268, %v1270
      %v1282 = vsel %vm737, %v1270, %v1272
      %v1283 = vsel %vm737, %v1272, %v1274
      %v1284 = vsel %vm737, %v1274, %v1276
      %v1285 = vsel %vm737, %v1276, %v1278
      %v1286 = vsel %vm737, %v1278, %v1280
      %v1294 = vld [vmem:[%s4] sm:$0xf]
      %v1295 = vpack.c.bf16 %v1088, %v1053
      %v1296 = vpack.c.bf16 %v1089, %v1054
      %v1297 = vpack.c.bf16 %v1090, %v1055
      %v1298 = vpack.c.bf16 %v1091, %v1056
      %v1299 = vpack.c.bf16 %v1092, %v1057
      %v1300 = vpack.c.bf16 %v1093, %v1058
      %v1301 = vpack.c.bf16 %v1087, %v1059
      %v1302 = vpack.c.bf16 %v1142, %v1115
      %v1303 = vpack.c.bf16 %v1143, %v1116
      %v1304 = vpack.c.bf16 %v1144, %v1117
      %v1305 = vpack.c.bf16 %v1145, %v1118
      %v1306 = vpack.c.bf16 %v1146, %v1119
      %v1307 = vpack.c.bf16 %v1147, %v1120
      %v1308 = vpack.c.bf16 %v1141, %v1114
      %v1309 = vpack.c.bf16 %v1187, %v1156
      %v1310 = vpack.c.bf16 %v1200, %v1167
      %v1311 = vpack.c.bf16 %v1201, %v1168
      %v1312 = vpack.c.bf16 %v1202, %v1169
      %v1313 = vpack.c.bf16 %v1203, %v1170
      %v1314 = vpack.c.bf16 %v1204, %v1171
      %v1315 = vpack.c.bf16 %v1205, %v1166
      %v1316 = vpack.c.bf16 %v1241, %v1214
      %v1317 = vpack.c.bf16 %v1254, %v1227
      %v1318 = vpack.c.bf16 %v1255, %v1228
      %v1319 = vpack.c.bf16 %v1256, %v1229
      %v1320 = vpack.c.bf16 %v1257, %v1230
      %v1321 = vpack.c.bf16 %v1258, %v1231
      %v1322 = vpack.c.bf16 %v1259, %v1232
      %v1323 = vpack.c.bf16 %v1268, %v1268
      %v1324 = vpack.c.bf16 %v1281, %v1281
      %v1325 = vpack.c.bf16 %v1282, %v1282
      %v1326 = vpack.c.bf16 %v1283, %v1283
      %v1327 = vpack.c.bf16 %v1284, %v1284
      %v1328 = vpack.c.bf16 %v1285, %v1285
      %v1329 = vpack.c.bf16 %v1286, %v1286
      %1365 = vrot.lane.b32.xlu0 %v1295, 19
      %v1366 = vpop.permute.xlu0 %1365
      %1367 = vrot.lane.b32.xlu0 %v1296, 19
      %v1368 = vpop.permute.xlu0 %1367
      %1369 = vrot.lane.b32.xlu0 %v1297, 19
      %v1370 = vpop.permute.xlu0 %1369
      %1371 = vrot.lane.b32.xlu0 %v1298, 19
      %v1372 = vpop.permute.xlu0 %1371
      %1373 = vrot.lane.b32.xlu0 %v1299, 19
      %v1374 = vpop.permute.xlu0 %1373
      %1375 = vrot.lane.b32.xlu0 %v1300, 19
      %v1376 = vpop.permute.xlu0 %1375
      %1377 = vrot.lane.b32.xlu0 %v1301, 19
      %v1378 = vpop.permute.xlu0 %1377
      %1379 = vrot.lane.b32.xlu0 %v1302, 19
      %v1380 = vpop.permute.xlu0 %1379
      %1381 = vrot.lane.b32.xlu0 %v1303, 19
      %v1382 = vpop.permute.xlu0 %1381
      %1383 = vrot.lane.b32.xlu0 %v1304, 19
      %v1384 = vpop.permute.xlu0 %1383
      %1385 = vrot.lane.b32.xlu0 %v1305, 19
      %v1386 = vpop.permute.xlu0 %1385
      %1387 = vrot.lane.b32.xlu0 %v1306, 19
      %v1388 = vpop.permute.xlu0 %1387
      %1389 = vrot.lane.b32.xlu0 %v1307, 19
      %v1390 = vpop.permute.xlu0 %1389
      %1391 = vrot.lane.b32.xlu0 %v1308, 19
      %v1392 = vpop.permute.xlu0 %1391
      %1393 = vrot.lane.b32.xlu0 %v1309, 19
      %v1394 = vpop.permute.xlu0 %1393
      %1395 = vrot.lane.b32.xlu0 %v1310, 19
      %v1396 = vpop.permute.xlu0 %1395
      %1397 = vrot.lane.b32.xlu0 %v1311, 19
      %v1398 = vpop.permute.xlu0 %1397
      %1399 = vrot.lane.b32.xlu0 %v1312, 19
      %v1400 = vpop.permute.xlu0 %1399
      %1401 = vrot.lane.b32.xlu0 %v1313, 19
      %v1402 = vpop.permute.xlu0 %1401
      %1403 = vrot.lane.b32.xlu0 %v1314, 19
      %v1404 = vpop.permute.xlu0 %1403
      %1405 = vrot.lane.b32.xlu0 %v1315, 19
      %v1406 = vpop.permute.xlu0 %1405
      %1407 = vrot.lane.b32.xlu0 %v1316, 19
      %v1408 = vpop.permute.xlu0 %1407
      %1409 = vrot.lane.b32.xlu0 %v1317, 19
      %v1410 = vpop.permute.xlu0 %1409
      %1411 = vrot.lane.b32.xlu0 %v1318, 19
      %v1412 = vpop.permute.xlu0 %1411
      %1413 = vrot.lane.b32.xlu0 %v1319, 19
      %v1414 = vpop.permute.xlu0 %1413
      %1415 = vrot.lane.b32.xlu0 %v1320, 19
      %v1416 = vpop.permute.xlu0 %1415
      %1417 = vrot.lane.b32.xlu0 %v1321, 19
      %v1418 = vpop.permute.xlu0 %1417
      %1419 = vrot.lane.b32.xlu0 %v1322, 19
      %v1420 = vpop.permute.xlu0 %1419
      %1421 = vrot.lane.b32.xlu0 %v1323, 19
      %v1422 = vpop.permute.xlu0 %1421
      %1423 = vrot.lane.b32.xlu0 %v1324, 19
      %v1424 = vpop.permute.xlu0 %1423
      %1425 = vrot.lane.b32.xlu0 %v1325, 19
      %v1426 = vpop.permute.xlu0 %1425
      %1427 = vrot.lane.b32.xlu0 %v1326, 19
      %v1428 = vpop.permute.xlu0 %1427
      %1429 = vrot.lane.b32.xlu0 %v1327, 19
      %v1430 = vpop.permute.xlu0 %1429
      %1431 = vrot.lane.b32.xlu0 %v1328, 19
      %v1432 = vpop.permute.xlu0 %1431
      %1433 = vrot.lane.b32.xlu0 %v1329, 19
      %v1434 = vpop.permute.xlu0 %1433
      %v1435 = vsel %vm865, %v1366, %v1368
      %v1436 = vsel %vm865, %v1368, %v1370
      %v1437 = vsel %vm865, %v1370, %v1372
      %v1438 = vsel %vm865, %v1372, %v1374
      %v1439 = vsel %vm865, %v1374, %v1376
      %v1440 = vsel %vm865, %v1376, %v1378
      %v1441 = vsel %vm865, %v1380, %v1382
      %v1442 = vsel %vm865, %v1382, %v1384
      %v1443 = vsel %vm865, %v1384, %v1386
      %v1444 = vsel %vm865, %v1386, %v1388
      %v1445 = vsel %vm865, %v1388, %v1390
      %v1446 = vsel %vm865, %v1390, %v1392
      %v1447 = vsel %vm865, %v1394, %v1396
      %v1448 = vsel %vm865, %v1396, %v1398
      %v1449 = vsel %vm865, %v1398, %v1400
      %v1450 = vsel %vm865, %v1400, %v1402
      %v1451 = vsel %vm865, %v1402, %v1404
      %v1452 = vsel %vm865, %v1404, %v1406
      %v1453 = vsel %vm865, %v1408, %v1410
      %v1454 = vsel %vm865, %v1410, %v1412
      %v1455 = vsel %vm865, %v1412, %v1414
      %v1456 = vsel %vm865, %v1414, %v1416
      %v1457 = vsel %vm865, %v1416, %v1418
      %v1458 = vsel %vm865, %v1418, %v1420
      %v1459 = vsel %vm865, %v1422, %v1424
      %v1460 = vsel %vm865, %v1424, %v1426
      %v1461 = vsel %vm865, %v1426, %v1428
      %v1462 = vsel %vm865, %v1428, %v1430
      %v1463 = vsel %vm865, %v1430, %v1432
      %v1464 = vsel %vm865, %v1432, %v1434
      %vm1489 = vcmask 588800
      %v1491 = vsel %vm1489, %v1294, 0
      %v1494 = vsel %vm751, %v1459, 0
      %v1497 = vsel %vm751, %v1460, 0
      %v1500 = vsel %vm751, %v1461, 0
      %v1503 = vsel %vm751, %v1462, 0
      %v1506 = vsel %vm751, %v1463, 0
      %v1509 = vsel %vm751, %v1464, 0
      %1511 = vmatpush.bf16.msra.mxu0 0
      %1512 = vmatpush.bf16.msra.mxu0 0
      %1513 = vmatpush.bf16.msra.mxu0 0
      %1514 = vmatpush.bf16.msra.mxu0 %v1494
      %1515 = vmatpush.bf16.msra.mxu0 %v1453
      %1516 = vmatpush.bf16.msra.mxu0 %v1447
      %1517 = vmatpush.bf16.msra.mxu0 %v1441
      %1518 = vmatpush.bf16.msra.mxu0 %v1435
      %1519 = vmatmul.bf16.gmra.mxu0 %v1491
      %v1520 = vpop.f32.mrf.mxu0
      %v1521 = vadd.f32 0.0, %v1520
      %v1522 = vpop.f32.mrf.mxu0
      %1523 = vdwg.mxu0
      %1524 = vmatpush.bf16.msra.mxu0 0
      %1525 = vmatpush.bf16.msra.mxu0 0
      %1526 = vmatpush.bf16.msra.mxu0 0
      %1527 = vmatpush.bf16.msra.mxu0 %v1497
      %1528 = vmatpush.bf16.msra.mxu0 %v1454
      %1529 = vmatpush.bf16.msra.mxu0 %v1448
      %1530 = vmatpush.bf16.msra.mxu0 %v1442
      %1531 = vmatpush.bf16.msra.mxu0 %v1436
      %1532 = vmatmul.bf16.gmra.mxu0 %v1491
      %v1533 = vpop.f32.mrf.mxu0
      %v1534 = vadd.f32 0.0, %v1533
      %v1535 = vpop.f32.mrf.mxu0
      %1536 = vdwg.mxu0
      %1537 = vmatpush.bf16.msra.mxu0 0
      %1538 = vmatpush.bf16.msra.mxu0 0
      %1539 = vmatpush.bf16.msra.mxu0 0
      %1540 = vmatpush.bf16.msra.mxu0 %v1500
      %1541 = vmatpush.bf16.msra.mxu0 %v1455
      %1542 = vmatpush.bf16.msra.mxu0 %v1449
      %1543 = vmatpush.bf16.msra.mxu0 %v1443
      %1544 = vmatpush.bf16.msra.mxu0 %v1437
      %1545 = vmatmul.bf16.gmra.mxu0 %v1491
      %v1546 = vpop.f32.mrf.mxu0
      %v1547 = vadd.f32 0.0, %v1546
      %v1548 = vpop.f32.mrf.mxu0
      %1549 = vdwg.mxu0
      %1550 = vmatpush.bf16.msra.mxu0 0
      %1551 = vmatpush.bf16.msra.mxu0 0
      %1552 = vmatpush.bf16.msra.mxu0 0
      %1553 = vmatpush.bf16.msra.mxu0 %v1503
      %1554 = vmatpush.bf16.msra.mxu0 %v1456
      %1555 = vmatpush.bf16.msra.mxu0 %v1450
      %1556 = vmatpush.bf16.msra.mxu0 %v1444
      %1557 = vmatpush.bf16.msra.mxu0 %v1438
      %1558 = vmatmul.bf16.gmra.mxu0 %v1491
      %v1559 = vpop.f32.mrf.mxu0
      %v1560 = vadd.f32 0.0, %v1559
      %v1561 = vpop.f32.mrf.mxu0
      %1562 = vdwg.mxu0
      %1563 = vmatpush.bf16.msra.mxu0 0
      %1564 = vmatpush.bf16.msra.mxu0 0
      %1565 = vmatpush.bf16.msra.mxu0 0
      %1566 = vmatpush.bf16.msra.mxu0 %v1506
      %1567 = vmatpush.bf16.msra.mxu0 %v1457
      %1568 = vmatpush.bf16.msra.mxu0 %v1451
      %1569 = vmatpush.bf16.msra.mxu0 %v1445
      %1570 = vmatpush.bf16.msra.mxu0 %v1439
      %1571 = vmatmul.bf16.gmra.mxu0 %v1491
      %v1572 = vpop.f32.mrf.mxu0
      %v1573 = vadd.f32 0.0, %v1572
      %v1574 = vpop.f32.mrf.mxu0
      %1575 = vdwg.mxu0
      %1576 = vmatpush.bf16.msra.mxu0 0
      %1577 = vmatpush.bf16.msra.mxu0 0
      %1578 = vmatpush.bf16.msra.mxu0 0
      %1579 = vmatpush.bf16.msra.mxu0 %v1509
      %1580 = vmatpush.bf16.msra.mxu0 %v1458
      %1581 = vmatpush.bf16.msra.mxu0 %v1452
      %1582 = vmatpush.bf16.msra.mxu0 %v1446
      %1583 = vmatpush.bf16.msra.mxu0 %v1440
      %1584 = vmatmul.bf16.gmra.mxu0 %v1491
      %v1585 = vpop.f32.mrf.mxu0
      %v1586 = vadd.f32 0.0, %v1585
      %v1587 = vpop.f32.mrf.mxu0
      %1588 = vdwg.mxu0
      %v1589 = vld [vmem:[%s5] sm:$0xff]
      %1591 = vset.pattern.permute.xlu0 0
      %1592 = vperm.xlu0 %1591, %v1589
      %v1593 = vpop.permute.xlu0 %1592
      %v1595 = vmul.f32 %v1521, %v1593
      %v1596 = vmul.f32 %v1534, %v1593
      %v1597 = vmul.f32 %v1547, %v1593
      %v1598 = vmul.f32 %v1560, %v1593
      %v1599 = vmul.f32 %v1573, %v1593
      %v1600 = vmul.f32 %v1586, %v1593
      %v1601 = vld [vmem:[%s6] sm:$0xff]
      %1603 = vset.pattern.permute.xlu0 0
      %1604 = vperm.xlu0 %1603, %v1601
      %v1605 = vpop.permute.xlu0 %1604
      %v1607 = vadd.f32 %v1595, %v1605
      %v1608 = vadd.f32 %v1596, %v1605
      %v1609 = vadd.f32 %v1597, %v1605
      %v1610 = vadd.f32 %v1598, %v1605
      %v1611 = vadd.f32 %v1599, %v1605
      %v1612 = vadd.f32 %v1600, %v1605
      %v1613 = vmax.f32 %v1607, 0.0
      %v1614 = vmax.f32 %v1608, 0.0
      %v1615 = vmax.f32 %v1609, 0.0
      %v1616 = vmax.f32 %v1610, 0.0
      %v1617 = vmax.f32 %v1611, 0.0
      %v1618 = vmax.f32 %v1612, 0.0
      %1619 = vst [vmem:[%s366] sm:$0xff] %v1613
      %1620 = vst [vmem:[%s366 + $0x8] sm:$0xff] %v1614
      %1621 = vst [vmem:[%s366 + $0x10] sm:$0xff] %v1615
      %1622 = vst [vmem:[%s366 + $0x18] sm:$0xff] %v1616
      %1623 = vst [vmem:[%s366 + $0x20] sm:$0xff] %v1617
      %1624 = vst [vmem:[%s366 + $0x28] sm:$0xff] %v1618
      %1631 = vrot.lane.b32.xlu0 %v1613, 127
      %v1632 = vpop.permute.xlu0 %1631
      %1633 = vrot.lane.b32.xlu0 %v1614, 127
      %v1634 = vpop.permute.xlu0 %1633
      %1635 = vrot.lane.b32.xlu0 %v1615, 127
      %v1636 = vpop.permute.xlu0 %1635
      %1637 = vrot.lane.b32.xlu0 %v1616, 127
      %v1638 = vpop.permute.xlu0 %1637
      %1639 = vrot.lane.b32.xlu0 %v1617, 127
      %v1640 = vpop.permute.xlu0 %1639
      %1641 = vrot.lane.b32.xlu0 %v1618, 127
      %v1642 = vpop.permute.xlu0 %1641
      %v1643 = vsel %vm439, %v1632, %v1634
      %v1644 = vsel %vm439, %v1634, %v1636
      %v1645 = vsel %vm439, %v1636, %v1638
      %v1646 = vsel %vm439, %v1638, %v1640
      %v1647 = vsel %vm439, %v1640, %v1642
      %v1655 = vsel %vm439, %v1642, %v1632
      %v1656 = vmax.f32 %v1613, %v1643
      %v1657 = vmax.f32 %v1614, %v1644
      %v1658 = vmax.f32 %v1615, %v1645
      %v1659 = vmax.f32 %v1616, %v1646
      %v1660 = vmax.f32 %v1617, %v1647
      %v1661 = vmax.f32 %v1618, %v1655
      %1668 = vrot.lane.b32.xlu0 %v1656, 110
      %v1669 = vpop.permute.xlu0 %1668
      %1670 = vrot.lane.b32.xlu0 %v1657, 110
      %v1671 = vpop.permute.xlu0 %1670
      %1672 = vrot.lane.b32.xlu0 %v1658, 110
      %v1673 = vpop.permute.xlu0 %1672
      %1674 = vrot.lane.b32.xlu0 %v1659, 110
      %v1675 = vpop.permute.xlu0 %1674
      %1676 = vrot.lane.b32.xlu0 %v1660, 110
      %v1677 = vpop.permute.xlu0 %1676
      %1678 = vrot.lane.b32.xlu0 %v1661, 110
      %v1679 = vpop.permute.xlu0 %1678
      %v1680 = vsel %vm524, %v1669, %v1671
      %v1681 = vsel %vm524, %v1671, %v1673
      %v1682 = vsel %vm524, %v1673, %v1675
      %v1683 = vsel %vm524, %v1675, %v1677
      %v1684 = vsel %vm524, %v1677, %v1679
      %v1692 = vsel %vm524, %v1679, %v1669
      %v1693 = vmax.f32 %v1656, %v1680
      %v1694 = vmax.f32 %v1657, %v1681
      %v1695 = vmax.f32 %v1658, %v1682
      %v1696 = vmax.f32 %v1659, %v1683
      %v1697 = vmax.f32 %v1660, %v1684
      %v1698 = vmax.f32 %v1661, %v1692
      %v1699 = vld [vmem:[%s8] sm:$0xff]
      %v1700 = vld [vmem:[%s8 + $0x8] sm:$0xff]
      %v1701 = vld [vmem:[%s8 + $0x10] sm:$0xff]
      %v1702 = vld [vmem:[%s8 + $0x18] sm:$0xff]
      %v1703 = vld [vmem:[%s8 + $0x20] sm:$0xff]
      %v1704 = vld [vmem:[%s8 + $0x28] sm:$0xff]
      %v1705 = vld [vmem:[%s8 + $0x30] sm:$0xff]
      %v1706 = vld [vmem:[%s8 + $0x38] sm:$0xff]
      %v1707 = vld [vmem:[%s8 + $0x40] sm:$0xff]
      %v1708 = vld [vmem:[%s8 + $0x48] sm:$0xff]
      %v1709 = vld [vmem:[%s8 + $0x50] sm:$0xff]
      %v1710 = vld [vmem:[%s8 + $0x58] sm:$0xff]
      %v1711 = vld [vmem:[%s8 + $0x60] sm:$0xff]
      %v1712 = vld [vmem:[%s8 + $0x68] sm:$0xff]
      %v1713 = vld [vmem:[%s8 + $0x70] sm:$0xff]
      %v1714 = vld [vmem:[%s8 + $0x78] sm:$0xff]
      %v1715 = vld [vmem:[%s8 + $0x80] sm:$0xff]
      %v1716 = vld [vmem:[%s8 + $0x88] sm:$0xff]
      %v1717 = vld [vmem:[%s8 + $0x90] sm:$0xff]
      %v1718 = vld [vmem:[%s8 + $0x98] sm:$0xff]
      %v1719 = vld [vmem:[%s8 + $0xa0] sm:$0xff]
      %v1720 = vld [vmem:[%s8 + $0xa8] sm:$0xff]
      %v1721 = vld [vmem:[%s8 + $0xb0] sm:$0xff]
      %v1722 = vld [vmem:[%s8 + $0xb8] sm:$0xff]
      %v1723 = vld [vmem:[%s8 + $0xc0] sm:$0xff]
      %v1724 = vld [vmem:[%s8 + $0xc8] sm:$0xff]
      %v1725 = vld [vmem:[%s8 + $0xd0] sm:$0xff]
      %v1726 = vld [vmem:[%s8 + $0xd8] sm:$0xff]
      %v1727 = vld [vmem:[%s8 + $0xe0] sm:$0xff]
      %v1728 = vld [vmem:[%s8 + $0xe8] sm:$0xff]
      %v1729 = vld [vmem:[%s8 + $0xf0] sm:$0xff]
      %v1730 = vld [vmem:[%s8 + $0xf8] sm:$0xff]
      %v1731 = vld [vmem:[%s8 + $0x100] sm:$0xff]
      %v1732 = vld [vmem:[%s8 + $0x108] sm:$0xff]
      %v1733 = vld [vmem:[%s8 + $0x110] sm:$0xff]
      %v1734 = vld [vmem:[%s8 + $0x118] sm:$0xff]
      %v1735 = vld [vmem:[%s8 + $0x120] sm:$0xff]
      %v1736 = vld [vmem:[%s8 + $0x128] sm:$0xff]
      %v1737 = vld [vmem:[%s8 + $0x130] sm:$0xff]
      %v1738 = vld [vmem:[%s8 + $0x138] sm:$0xff]
      %v1739 = vld [vmem:[%s8 + $0x140] sm:$0xff]
      %v1740 = vld [vmem:[%s8 + $0x148] sm:$0xff]
      %v1741 = vld [vmem:[%s8 + $0x150] sm:$0xff]
      %v1742 = vld [vmem:[%s8 + $0x158] sm:$0xff]
      %v1743 = vld [vmem:[%s8 + $0x160] sm:$0xff]
      %v1744 = vld [vmem:[%s8 + $0x168] sm:$0xff]
      %v1745 = vld [vmem:[%s8 + $0x170] sm:$0xff]
      %v1746 = vld [vmem:[%s8 + $0x178] sm:$0xff]
      %v1747 = vld [vmem:[%s8 + $0x180] sm:$0xff]
      %v1748 = vld [vmem:[%s8 + $0x188] sm:$0xff]
      %v1749 = vld [vmem:[%s8 + $0x190] sm:$0xff]
      %v1750 = vld [vmem:[%s8 + $0x198] sm:$0xff]
      %v1751 = vld [vmem:[%s8 + $0x1a0] sm:$0xff]
      %v1752 = vld [vmem:[%s8 + $0x1a8] sm:$0xff]
      %v1753 = vld [vmem:[%s8 + $0x1b0] sm:$0xff]
      %v1754 = vld [vmem:[%s8 + $0x1b8] sm:$0xff]
      %v1755 = vld [vmem:[%s8 + $0x1c0] sm:$0xff]
      %v1756 = vld [vmem:[%s8 + $0x1c8] sm:$0xff]
      %v1757 = vld [vmem:[%s8 + $0x1d0] sm:$0xff]
      %v1758 = vld [vmem:[%s8 + $0x1d8] sm:$0xff]
      %v1759 = vld [vmem:[%s8 + $0x1e0] sm:$0xff]
      %v1760 = vld [vmem:[%s8 + $0x1e8] sm:$0xff]
      %v1761 = vld [vmem:[%s8 + $0x1f0] sm:$0xff]
      %v1762 = vld [vmem:[%s8 + $0x1f8] sm:$0xff]
      %v1763 = vld [vmem:[%s8 + $0x200] sm:$0xff]
      %v1764 = vld [vmem:[%s8 + $0x208] sm:$0xff]
      %v1765 = vld [vmem:[%s8 + $0x210] sm:$0xff]
      %v1766 = vld [vmem:[%s8 + $0x218] sm:$0xff]
      %v1767 = vld [vmem:[%s8 + $0x220] sm:$0xff]
      %v1768 = vld [vmem:[%s8 + $0x228] sm:$0xff]
      %v1769 = vld [vmem:[%s8 + $0x230] sm:$0xff]
      %v1770 = vld [vmem:[%s8 + $0x238] sm:$0xff]
      %v1771 = vld [vmem:[%s8 + $0x240] sm:$0xff]
      %v1772 = vld [vmem:[%s8 + $0x248] sm:$0xff]
      %v1773 = vld [vmem:[%s8 + $0x250] sm:$0xff]
      %v1774 = vld [vmem:[%s8 + $0x258] sm:$0xff]
      %v1775 = vld [vmem:[%s8 + $0x260] sm:$0xff]
      %v1776 = vld [vmem:[%s8 + $0x268] sm:$0xff]
      %v1777 = vld [vmem:[%s8 + $0x270] sm:$0xff]
      %v1778 = vld [vmem:[%s8 + $0x278] sm:$0xff]
      %v1779 = vld [vmem:[%s8 + $0x280] sm:$0xff]
      %v1780 = vld [vmem:[%s8 + $0x288] sm:$0xff]
      %v1781 = vld [vmem:[%s8 + $0x290] sm:$0xff]
      %v1782 = vld [vmem:[%s8 + $0x298] sm:$0xff]
      %v1783 = vld [vmem:[%s8 + $0x2a0] sm:$0xff]
      %v1784 = vld [vmem:[%s8 + $0x2a8] sm:$0xff]
      %v1785 = vld [vmem:[%s8 + $0x2b0] sm:$0xff]
      %v1786 = vld [vmem:[%s8 + $0x2b8] sm:$0xff]
      %v1787 = vld [vmem:[%s8 + $0x2c0] sm:$0xff]
      %v1788 = vld [vmem:[%s8 + $0x2c8] sm:$0xff]
      %v1789 = vld [vmem:[%s8 + $0x2d0] sm:$0xff]
      %v1790 = vld [vmem:[%s8 + $0x2d8] sm:$0xff]
      %v1791 = vld [vmem:[%s8 + $0x2e0] sm:$0xff]
      %v1792 = vld [vmem:[%s8 + $0x2e8] sm:$0xff]
      %v1793 = vld [vmem:[%s8 + $0x2f0] sm:$0xff]
      %v1794 = vld [vmem:[%s8 + $0x2f8] sm:$0xff]
      %1795 = vmatpush.msra.mxu0 %v1714
      %1796 = vmatpush.msra.mxu0 %v1713
      %1797 = vmatpush.msra.mxu0 %v1712
      %1798 = vmatpush.msra.mxu0 %v1711
      %1799 = vmatpush.msra.mxu0 %v1710
      %1800 = vmatpush.msra.mxu0 %v1709
      %1801 = vmatpush.msra.mxu0 %v1708
      %1802 = vmatpush.msra.mxu0 %v1707
      %1803 = vmatpush.msra.mxu0 %v1706
      %1804 = vmatpush.msra.mxu0 %v1705
      %1805 = vmatpush.msra.mxu0 %v1704
      %1806 = vmatpush.msra.mxu0 %v1703
      %1807 = vmatpush.msra.mxu0 %v1702
      %1808 = vmatpush.msra.mxu0 %v1701
      %1809 = vmatpush.msra.mxu0 %v1700
      %1810 = vmatpush.msra.mxu0 %v1699
      %1811 = vmatmul.f32.gmra.mxu0 %v1693
      %v1812 = vpop.f32.mrf.mxu0
      %v1813 = vadd.f32 0.0, %v1812
      %1814 = vdwg.mxu0
      %1815 = vmatpush.msra.mxu0 %v1730
      %1816 = vmatpush.msra.mxu0 %v1729
      %1817 = vmatpush.msra.mxu0 %v1728
      %1818 = vmatpush.msra.mxu0 %v1727
      %1819 = vmatpush.msra.mxu0 %v1726
      %1820 = vmatpush.msra.mxu0 %v1725
      %1821 = vmatpush.msra.mxu0 %v1724
      %1822 = vmatpush.msra.mxu0 %v1723
      %1823 = vmatpush.msra.mxu0 %v1722
      %1824 = vmatpush.msra.mxu0 %v1721
      %1825 = vmatpush.msra.mxu0 %v1720
      %1826 = vmatpush.msra.mxu0 %v1719
      %1827 = vmatpush.msra.mxu0 %v1718
      %1828 = vmatpush.msra.mxu0 %v1717
      %1829 = vmatpush.msra.mxu0 %v1716
      %1830 = vmatpush.msra.mxu0 %v1715
      %1831 = vmatmul.f32.gmra.mxu0 %v1694
      %v1832 = vpop.f32.mrf.mxu0
      %v1833 = vadd.f32 %v1813, %v1832
      %1834 = vdwg.mxu0
      %1835 = vmatpush.msra.mxu0 %v1746
      %1836 = vmatpush.msra.mxu0 %v1745
      %1837 = vmatpush.msra.mxu0 %v1744
      %1838 = vmatpush.msra.mxu0 %v1743
      %1839 = vmatpush.msra.mxu0 %v1742
      %1840 = vmatpush.msra.mxu0 %v1741
      %1841 = vmatpush.msra.mxu0 %v1740
      %1842 = vmatpush.msra.mxu0 %v1739
      %1843 = vmatpush.msra.mxu0 %v1738
      %1844 = vmatpush.msra.mxu0 %v1737
      %1845 = vmatpush.msra.mxu0 %v1736
      %1846 = vmatpush.msra.mxu0 %v1735
      %1847 = vmatpush.msra.mxu0 %v1734
      %1848 = vmatpush.msra.mxu0 %v1733
      %1849 = vmatpush.msra.mxu0 %v1732
      %1850 = vmatpush.msra.mxu0 %v1731
      %1851 = vmatmul.f32.gmra.mxu0 %v1695
      %v1852 = vpop.f32.mrf.mxu0
      %v1853 = vadd.f32 %v1833, %v1852
      %1854 = vdwg.mxu0
      %1855 = vmatpush.msra.mxu0 %v1762
      %1856 = vmatpush.msra.mxu0 %v1761
      %1857 = vmatpush.msra.mxu0 %v1760
      %1858 = vmatpush.msra.mxu0 %v1759
      %1859 = vmatpush.msra.mxu0 %v1758
      %1860 = vmatpush.msra.mxu0 %v1757
      %1861 = vmatpush.msra.mxu0 %v1756
      %1862 = vmatpush.msra.mxu0 %v1755
      %1863 = vmatpush.msra.mxu0 %v1754
      %1864 = vmatpush.msra.mxu0 %v1753
      %1865 = vmatpush.msra.mxu0 %v1752
      %1866 = vmatpush.msra.mxu0 %v1751
      %1867 = vmatpush.msra.mxu0 %v1750
      %1868 = vmatpush.msra.mxu0 %v1749
      %1869 = vmatpush.msra.mxu0 %v1748
      %1870 = vmatpush.msra.mxu0 %v1747
      %1871 = vmatmul.f32.gmra.mxu0 %v1696
      %v1872 = vpop.f32.mrf.mxu0
      %v1873 = vadd.f32 %v1853, %v1872
      %1874 = vdwg.mxu0
      %1875 = vmatpush.msra.mxu0 %v1778
      %1876 = vmatpush.msra.mxu0 %v1777
      %1877 = vmatpush.msra.mxu0 %v1776
      %1878 = vmatpush.msra.mxu0 %v1775
      %1879 = vmatpush.msra.mxu0 %v1774
      %1880 = vmatpush.msra.mxu0 %v1773
      %1881 = vmatpush.msra.mxu0 %v1772
      %1882 = vmatpush.msra.mxu0 %v1771
      %1883 = vmatpush.msra.mxu0 %v1770
      %1884 = vmatpush.msra.mxu0 %v1769
      %1885 = vmatpush.msra.mxu0 %v1768
      %1886 = vmatpush.msra.mxu0 %v1767
      %1887 = vmatpush.msra.mxu0 %v1766
      %1888 = vmatpush.msra.mxu0 %v1765
      %1889 = vmatpush.msra.mxu0 %v1764
      %1890 = vmatpush.msra.mxu0 %v1763
      %1891 = vmatmul.f32.gmra.mxu0 %v1697
      %v1892 = vpop.f32.mrf.mxu0
      %v1893 = vadd.f32 %v1873, %v1892
      %1894 = vdwg.mxu0
      %1895 = vmatpush.msra.mxu0 %v1794
      %1896 = vmatpush.msra.mxu0 %v1793
      %1897 = vmatpush.msra.mxu0 %v1792
      %1898 = vmatpush.msra.mxu0 %v1791
      %1899 = vmatpush.msra.mxu0 %v1790
      %1900 = vmatpush.msra.mxu0 %v1789
      %1901 = vmatpush.msra.mxu0 %v1788
      %1902 = vmatpush.msra.mxu0 %v1787
      %1903 = vmatpush.msra.mxu0 %v1786
      %1904 = vmatpush.msra.mxu0 %v1785
      %1905 = vmatpush.msra.mxu0 %v1784
      %1906 = vmatpush.msra.mxu0 %v1783
      %1907 = vmatpush.msra.mxu0 %v1782
      %1908 = vmatpush.msra.mxu0 %v1781
      %1909 = vmatpush.msra.mxu0 %v1780
      %1910 = vmatpush.msra.mxu0 %v1779
      %1911 = vmatmul.f32.gmra.mxu0 %v1698
      %v1912 = vpop.f32.mrf.mxu0
      %v1913 = vadd.f32 %v1893, %v1912
      %1914 = vdwg.mxu0
      %1915 = vst [vmem:[%s370] sm:$0xff] %v1913
      %p1916 = scmp.lt.s32.totalorder %s22, 1
      %s1917 = scalar_select %p1916, %s22, 1
      %s1918 = smul.addr %s1917, 6
      %s1919 = smul.addr %s1918, 8
      %s1920 = scalar_lea.vmem %s9, %s1919
      %p1921 = scmp.lt.s32.totalorder %s22, 1
      %s1922 = scalar_select %p1921, %s22, 1
      %s1923 = smul.addr %s1922, 8
      %s1924 = scalar_lea.vmem %s10, %s1923
      // Predicated region
      $region57: #{encoder_block_forward.1} parent=55 // pred_check
        %p1925 = pneg %p234
      $region58: #{encoder_block_forward.1} parent=55 // pred_check_branch
        %1927 = sbr.rel (%p1925) target = $region60
      $region59: #{encoder_block_forward.1} parent=55 // pred_region
        _
      $region60: #{encoder_block_forward.1} parent=55 // pred_fallthru
        _
      // Predicated region
      $region61: #{encoder_block_forward.1} parent=55 // pred_check
        %p1928 = pneg %p260
      $region62: #{encoder_block_forward.1} parent=55 // pred_check_branch
        %1930 = sbr.rel (%p1928) target = $region64
      $region63: #{encoder_block_forward.1} parent=55 // pred_region
        _
      $region64: #{encoder_block_forward.1} parent=55 // pred_fallthru
        _
    $region56: #{encoder_block_forward.1} parent=5 // pred_fallthru
      _
    %p1931 = scmp.le.s32.totalorder 2, %s17
    // Predicated region
    $region65: #{encoder_block_forward.1} parent=5 // pred_check
      %p1932 = pneg %p1931
    $region66: #{encoder_block_forward.1} parent=5 // pred_check_branch
      %1934 = sbr.rel (%p1932) target = $region68
    $region67: #{encoder_block_forward.1} parent=5 // pred_region
      %s1935 = ssub.s32 %s17, 2
      // Predicated region
      $region69: #{encoder_block_forward.1} parent=67 // pred_check
        %p1936 = pneg %p240
      $region70: #{encoder_block_forward.1} parent=67 // pred_check_branch
        %1938 = sbr.rel (%p1936) target = $region72
      $region71: #{encoder_block_forward.1} parent=67 // pred_region
        %p1939 = scmp.lt.s32.totalorder %s23, 1
        %s1940 = scalar_select %p1939, %s23, 1
        %s1941 = smul.addr %s1940, 6
        %s1942 = smul.addr %s1941, 8
        %s1943 = scalar_lea.vmem %s9, %s1942
      $region72: #{encoder_block_forward.1} parent=67 // pred_fallthru
        _
      // Predicated region
      $region73: #{encoder_block_forward.1} parent=67 // pred_check
        %p1944 = pneg %p266
      $region74: #{encoder_block_forward.1} parent=67 // pred_check_branch
        %1946 = sbr.rel (%p1944) target = $region76
      $region75: #{encoder_block_forward.1} parent=67 // pred_region
        %p1947 = scmp.lt.s32.totalorder %s23, 1
        %s1948 = scalar_select %p1947, %s23, 1
        %s1949 = smul.addr %s1948, 8
        %s1950 = scalar_lea.vmem %s10, %s1949
      $region76: #{encoder_block_forward.1} parent=67 // pred_fallthru
        _
    $region68: #{encoder_block_forward.1} parent=5 // pred_fallthru
      _
  $region6: #{encoder_block_forward.1} parent=0 // loop_footer
    %s21 = sadd.s32 1, %s17
  $region7: #{encoder_block_forward.1} parent=0 // loop_footer_branch
    %16 = sbr.rel target = $region3
  $region8: #{encoder_block_forward.1} parent=0 // loop_exit
    _

</llo_original>
